<compile_context>
chip_gen: v6e
topology: v6e:2x2x1
jax: 0.10.0
libtpu: 0.0.40
codegen_flags: <defaults>
</compile_context>

<pallas_src>
import functools
import math

import jax
import jax.numpy as jnp
import numpy as np
from jax import lax
from jax.experimental import pallas as pl
from jax.experimental.pallas import tpu as pltpu

_EPS = 1e-5


# ----------------------------- helpers (traced inside the kernel) -------------


def _softshrink(x, lam):
    return jnp.where(x > lam, x - lam, jnp.where(x < -lam, x + lam, jnp.zeros_like(x)))


def _bn_ncp(t, denom):
    """BatchNorm2d, training mode (weight=1, bias=0, biased variance).
    t: (N, C, P); per-channel stats over batch (axis 0) and pixels (axis 2)."""
    s = jnp.sum(t, axis=2, keepdims=True)
    s = jnp.sum(s, axis=0, keepdims=True)
    mean = s * (1.0 / denom)
    d = t - mean
    s2 = jnp.sum(d * d, axis=2, keepdims=True)
    s2 = jnp.sum(s2, axis=0, keepdims=True)
    var = s2 * (1.0 / denom)
    return d * lax.rsqrt(var + _EPS)


# ----------------------------- fused Pallas kernel ----------------------------


def _lst1_kernel(x_ref, w1_ref, w2_ref, w3_ref, mask_ref, out_ref, *,
                 W, k, a, pad, tau):
    """Full LST1Block forward in (N, C, H*W) layout (lanes carry H*W)."""
    N, _, HW = x_ref.shape
    Cout = w1_ref.shape[0]
    aa = a * a
    denom = float(N * HW)

    x = x_ref[...]                                             # (N, Cin, HW)

    # ---- conv1 (1x1): weights as LHS -> wide MXU output dim carries HW ------
    w1b = jnp.broadcast_to(w1_ref[...][None], (N, Cout, w1_ref.shape[1]))
    y = lax.dot_general(w1b, x, (((2,), (1,)), ((0,), (0,))),
                        preferred_element_type=jnp.float32)     # (N, Cout, HW)
    y = _bn_ncp(y, denom)                                       # bn1
    y = _softshrink(y, tau)                                     # softshrink

    # ---- grouped kxk conv (groups = Cout), vectorized over all groups -------
    # mid channel (m, g): accs[m][n, g, p] = sum_t w2[m, t] * tap_t[n, g, p]
    accs = [jnp.zeros((N, Cout, HW), jnp.float32) for _ in range(aa)]
    for di in range(k):
        for dj in range(k):
            t = di * k + dj
            off = (di - pad) * W + (dj - pad)
            shift = (-off) % HW
            rolled = pltpu.roll(y, shift, axis=2) if shift else y
            tap = rolled * mask_ref[t:t + 1, :].reshape(1, 1, HW)
            for m in range(aa):
                accs[m] = accs[m] + w2_ref[m, t] * tap          # scalar from SMEM

    # ---- bn2 -> relu -> conv3 (1x1), accumulated over the aa sub-filters ----
    out3 = jnp.zeros((N, Cout, HW), jnp.float32)
    for m in range(aa):
        z = jnp.maximum(_bn_ncp(accs[m], denom), 0.0)           # bn2 + relu
        w3b = jnp.broadcast_to(w3_ref[m][None], (N, Cout, Cout))
        out3 = out3 + lax.dot_general(w3b, z, (((2,), (1,)), ((0,), (0,))),
                                      preferred_element_type=jnp.float32)

    # ---- bn3 -> residual add (downsample=None, stride=1) -> softshrink ------
    out3 = _bn_ncp(out3, denom)                                 # bn3
    out_ref[...] = _softshrink(x + out3, tau)                   # lane-dense store


# ----------------------------- wrapper ----------------------------------------


def _tap_masks(H, W, k, pad):
    """(k*k, H*W) float32: 1 where the (di, dj) tap is in-bounds for that pixel."""
    hh, ww = np.meshgrid(np.arange(H), np.arange(W), indexing="ij")
    rows = []
    for di in range(k):
        for dj in range(k):
            dh, dw = di - pad, dj - pad
            ok = ((hh + dh >= 0) & (hh + dh < H) &
                  (ww + dw >= 0) & (ww + dw < W))
            rows.append(ok.reshape(-1).astype(np.float32))
    return jnp.asarray(np.stack(rows, axis=0))


def lst1block_forward(x_nchw, params, *, k=3, a=2, tau=1e-4):
    # TODO(synk): stride > 1 / downsample branch not implemented (module is
    # exercised with stride=1, downsample=None, as the residual add requires).
    N, C, H, W = x_nchw.shape
    w1 = params["w1"]
    Cout = w1.shape[0]
    assert Cout == C, "residual add requires in_chnls == out_chnls"
    pad = (k - 1) // 2
    HW = H * W

    x3 = x_nchw.reshape(N, C, HW).astype(jnp.float32)   # free reshape, no transpose
    mask = _tap_masks(H, W, k, pad)

    out = pl.pallas_call(
        functools.partial(_lst1_kernel, W=W, k=k, a=a, pad=pad, tau=tau),
        out_shape=jax.ShapeDtypeStruct((N, Cout, HW), jnp.float32),
        in_specs=[
            pl.BlockSpec(memory_space=pltpu.MemorySpace.VMEM),   # x       (N,Cin,HW)
            pl.BlockSpec(memory_space=pltpu.MemorySpace.VMEM),   # weight1 (Cout,Cin)
            pl.BlockSpec(memory_space=pltpu.MemorySpace.SMEM),   # weight2 (aa,k*k) scalars
            pl.BlockSpec(memory_space=pltpu.MemorySpace.VMEM),   # conv3 w (aa,Cout,Cout)
            pl.BlockSpec(memory_space=pltpu.MemorySpace.VMEM),   # tap masks (k*k,HW)
        ],
        out_specs=pl.BlockSpec(memory_space=pltpu.MemorySpace.VMEM),
    )(x3, w1, params["w2_flat"], params["w3_r"], mask)

    return out.reshape(N, Cout, H, W)                    # free reshape back to NCHW


# ----------------------------- deterministic parameter init -------------------


def dct_init(n_freq, n_pos):
    # Orthonormal DCT-II basis (frequencies x positions), as used by the block.
    i = np.arange(n_freq, dtype=np.float64)[:, None]
    j = np.arange(n_pos, dtype=np.float64)[None, :]
    m = np.sqrt(2.0 / n_pos) * np.cos(np.pi * (2.0 * j + 1.0) * i / (2.0 * n_pos))
    m[0, :] *= 1.0 / np.sqrt(2.0)
    return m.astype(np.float32)


def make_params(in_chnls, out_chnls, *, k=3, a=2, seed=0):
    aa = a * a
    # weight1: DCT init, shape (out, in, 1, 1)
    w1_2d = dct_init(out_chnls, in_chnls)
    w1_oihw = jnp.asarray(w1_2d.reshape(out_chnls, in_chnls, 1, 1))
    # weight2: separable DCT init, shape (a*a, 1, k, k):
    #   weight2[i*a + j, 0, r, c] = dct[i, c] * dct[j, r]
    dct_ak = dct_init(a, k)
    w2 = np.zeros((aa, 1, k, k), np.float32)
    for i in range(a):
        for j in range(a):
            w2[i * a + j, 0] = np.outer(dct_ak[j], dct_ak[i])
    w2_oihw = jnp.asarray(w2)
    # conv3: default Conv2d (kaiming-uniform-like) init, no bias
    fan_in = out_chnls * aa
    bound = 1.0 / math.sqrt(fan_in)
    w3_oihw = jax.random.uniform(jax.random.PRNGKey(seed),
                                 (out_chnls, out_chnls * aa, 1, 1),
                                 jnp.float32, -bound, bound)

    # kernel-side layouts
    w1 = jnp.asarray(w1_2d)                                    # (out, in)
    w2_flat = jnp.asarray(w2[:, 0].reshape(aa, k * k))         # (aa, k*k)
    w3_2d = np.asarray(w3_oihw)[:, :, 0, 0]                    # (out, out*aa)
    # permute conv3 columns from (g, m) to (m, g) ordering: w3_r[m, o, g]
    w3_r = jnp.asarray(w3_2d.reshape(out_chnls, out_chnls, aa).transpose(2, 0, 1))

    return {"w1_oihw": w1_oihw, "w2_oihw": w2_oihw, "w3_oihw": w3_oihw,
            "w1": w1, "w2_flat": w2_flat, "w3_r": w3_r}


# ----------------------------- pure-JAX reference (for checking) --------------


def reference_forward(x, p, *, k=3, a=2, tau=1e-4):
    out_ch = p["w1_oihw"].shape[0]
    pad = (k - 1) // 2
    dn = ("NCHW", "OIHW", "NCHW")

    def bn(t):
        mean = jnp.mean(t, axis=(0, 2, 3), keepdims=True)
        var = jnp.mean(jnp.square(t - mean), axis=(0, 2, 3), keepdims=True)
        return (t - mean) * lax.rsqrt(var + _EPS)

    y2 = lax.conv_general_dilated(x, p["w1_oihw"], (1, 1), "VALID",
                                  dimension_numbers=dn)
    y2 = _softshrink(bn(y2), tau)
    w = jnp.tile(p["w2_oihw"], (out_ch, 1, 1, 1))
    y2 = lax.conv_general_dilated(y2, w, (1, 1), [(pad, pad), (pad, pad)],
                                  dimension_numbers=dn, feature_group_count=out_ch)
    y2 = jnp.maximum(bn(y2), 0.0)
    y2 = lax.conv_general_dilated(y2, p["w3_oihw"], (1, 1), "VALID",
                                  dimension_numbers=dn)
    y2 = bn(y2)
    return _softshrink(x + y2, tau)


# ----------------------------- main --------------------------------------------


if __name__ == "__main__":
    in_chnls = out_chnls = 16
    k, a, tau = 3, 2, 1e-4
    N, H, W = 2, 16, 16

    params = make_params(in_chnls, out_chnls, k=k, a=a, seed=0)
    x = jax.random.normal(jax.random.fold_in(jax.random.PRNGKey(0), 1),
                          (N, in_chnls, H, W), jnp.float32)

    out = lst1block_forward(x, params, k=k, a=a, tau=tau)
    out = jax.block_until_ready(out)

    ref = reference_forward(x, params, k=k, a=a, tau=tau)
    np.testing.assert_allclose(np.asarray(out), np.asarray(ref), rtol=1e-2, atol=1e-2)

    print("KERNEL_OK")
</pallas_src>

<mosaic_0001>
module attributes {stable_mosaic.version = 11 : i64} {
  func.func @_lst1_kernel(%arg0: memref<2x16x256xf32, #tpu.memory_space<vmem>>, %arg1: memref<16x16xf32, #tpu.memory_space<vmem>>, %arg2: memref<4x9xf32, #tpu.memory_space<smem>>, %arg3: memref<4x16x16xf32, #tpu.memory_space<vmem>>, %arg4: memref<9x256xf32, #tpu.memory_space<vmem>>, %arg5: memref<2x16x256xf32, #tpu.memory_space<vmem>>) attributes {dimension_semantics = [], scalar_prefetch = 0 : i64, scratch_operands = 0 : i64, tpu.core_type = #tpu.core_type<tc>} {
    %c0 = arith.constant 0 : index
    %c0_0 = arith.constant 0 : index
    %c0_1 = arith.constant 0 : index
    %0 = vector.load %arg0[%c0, %c0_0, %c0_1] : memref<2x16x256xf32, #tpu.memory_space<vmem>>, vector<2x16x256xf32>
    %c0_2 = arith.constant 0 : index
    %c0_3 = arith.constant 0 : index
    %1 = vector.load %arg1[%c0_2, %c0_3] : memref<16x16xf32, #tpu.memory_space<vmem>>, vector<16x16xf32>
    %2 = vector.shape_cast %1 : vector<16x16xf32> to vector<1x16x16xf32>
    %3 = vector.shape_cast %2 : vector<1x16x16xf32> to vector<1x16x16xf32>
    %4 = vector.broadcast %3 : vector<1x16x16xf32> to vector<2x16x16xf32>
    %cst = arith.constant dense<0.000000e+00> : vector<2x16x256xf32>
    %5 = tpu.matmul %4, %0, %cst {dimension_numbers = #tpu.dot_dimension_numbers<[2], [1], [1], [2], [0, 0, 0, 1, 1, 2], [0], [0]>} : vector<2x16x16xf32>, vector<2x16x256xf32>, vector<2x16x256xf32> -> vector<2x16x256xf32>
    %cst_4 = arith.constant dense<0.000000e+00> : vector<2x16xf32>
    %6 = vector.multi_reduction <add>, %5, %cst_4 [2] : vector<2x16x256xf32> to vector<2x16xf32>
    %7 = vector.shape_cast %6 : vector<2x16xf32> to vector<2x16x1xf32>
    %cst_5 = arith.constant dense<0.000000e+00> : vector<16x1xf32>
    %8 = vector.multi_reduction <add>, %7, %cst_5 [0] : vector<2x16x1xf32> to vector<16x1xf32>
    %9 = vector.shape_cast %8 : vector<16x1xf32> to vector<1x16x1xf32>
    %cst_6 = arith.constant 0.001953125 : f32
    %10 = vector.broadcast %cst_6 : f32 to vector<1x16x1xf32>
    %11 = arith.mulf %9, %10 : vector<1x16x1xf32>
    %12 = vector.broadcast %11 : vector<1x16x1xf32> to vector<2x16x256xf32>
    %13 = arith.subf %5, %12 : vector<2x16x256xf32>
    %14 = arith.mulf %13, %13 : vector<2x16x256xf32>
    %cst_7 = arith.constant dense<0.000000e+00> : vector<2x16xf32>
    %15 = vector.multi_reduction <add>, %14, %cst_7 [2] : vector<2x16x256xf32> to vector<2x16xf32>
    %16 = vector.shape_cast %15 : vector<2x16xf32> to vector<2x16x1xf32>
    %cst_8 = arith.constant dense<0.000000e+00> : vector<16x1xf32>
    %17 = vector.multi_reduction <add>, %16, %cst_8 [0] : vector<2x16x1xf32> to vector<16x1xf32>
    %18 = vector.shape_cast %17 : vector<16x1xf32> to vector<1x16x1xf32>
    %cst_9 = arith.constant 0.001953125 : f32
    %19 = vector.broadcast %cst_9 : f32 to vector<1x16x1xf32>
    %20 = arith.mulf %18, %19 : vector<1x16x1xf32>
    %cst_10 = arith.constant 9.99999974E-6 : f32
    %21 = vector.broadcast %cst_10 : f32 to vector<1x16x1xf32>
    %22 = arith.addf %20, %21 : vector<1x16x1xf32>
    %23 = math.rsqrt %22 : vector<1x16x1xf32>
    %24 = vector.broadcast %23 : vector<1x16x1xf32> to vector<2x16x256xf32>
    %25 = arith.mulf %13, %24 : vector<2x16x256xf32>
    %cst_11 = arith.constant 9.99999974E-5 : f32
    %26 = vector.broadcast %cst_11 : f32 to vector<2x16x256xf32>
    %27 = arith.cmpf ogt, %25, %26 : vector<2x16x256xf32>
    %cst_12 = arith.constant 9.99999974E-5 : f32
    %28 = vector.broadcast %cst_12 : f32 to vector<2x16x256xf32>
    %29 = arith.subf %25, %28 : vector<2x16x256xf32>
    %cst_13 = arith.constant -9.99999974E-5 : f32
    %30 = vector.broadcast %cst_13 : f32 to vector<2x16x256xf32>
    %31 = arith.cmpf olt, %25, %30 : vector<2x16x256xf32>
    %cst_14 = arith.constant 9.99999974E-5 : f32
    %32 = vector.broadcast %cst_14 : f32 to vector<2x16x256xf32>
    %33 = arith.addf %25, %32 : vector<2x16x256xf32>
    %cst_15 = arith.constant 0.000000e+00 : f32
    %34 = vector.broadcast %cst_15 : f32 to vector<2x16x256xf32>
    %35 = arith.select %31, %33, %34 : vector<2x16x256xi1>, vector<2x16x256xf32>
    %36 = arith.select %27, %29, %35 : vector<2x16x256xi1>, vector<2x16x256xf32>
    %cst_16 = arith.constant 0.000000e+00 : f32
    %37 = vector.broadcast %cst_16 : f32 to vector<2x16x256xf32>
    %cst_17 = arith.constant 0.000000e+00 : f32
    %38 = vector.broadcast %cst_17 : f32 to vector<2x16x256xf32>
    %cst_18 = arith.constant 0.000000e+00 : f32
    %39 = vector.broadcast %cst_18 : f32 to vector<2x16x256xf32>
    %cst_19 = arith.constant 0.000000e+00 : f32
    %40 = vector.broadcast %cst_19 : f32 to vector<2x16x256xf32>
    %c17_i32 = arith.constant 17 : i32
    %41 = tpu.dynamic_rotate %36 by %c17_i32 dim 2 : vector<2x16x256xf32>, i32 -> vector<2x16x256xf32>
    %c0_20 = arith.constant 0 : index
    %c0_21 = arith.constant 0 : index
    %42 = vector.load %arg4[%c0_20, %c0_21] : memref<9x256xf32, #tpu.memory_space<vmem>>, vector<1x256xf32>
    %43 = vector.shape_cast %42 : vector<1x256xf32> to vector<1x1x256xf32>
    %44 = vector.broadcast %43 : vector<1x1x256xf32> to vector<2x16x256xf32>
    %45 = arith.mulf %41, %44 : vector<2x16x256xf32>
    %c0_22 = arith.constant 0 : index
    %c0_23 = arith.constant 0 : index
    %46 = memref.load %arg2[%c0_22, %c0_23] : memref<4x9xf32, #tpu.memory_space<smem>>
    %47 = vector.broadcast %46 : f32 to vector<2x16x256xf32>
    %48 = arith.mulf %47, %45 : vector<2x16x256xf32>
    %49 = arith.addf %37, %48 : vector<2x16x256xf32>
    %c1 = arith.constant 1 : index
    %c0_24 = arith.constant 0 : index
    %50 = memref.load %arg2[%c1, %c0_24] : memref<4x9xf32, #tpu.memory_space<smem>>
    %51 = vector.broadcast %50 : f32 to vector<2x16x256xf32>
    %52 = arith.mulf %51, %45 : vector<2x16x256xf32>
    %53 = arith.addf %38, %52 : vector<2x16x256xf32>
    %c2 = arith.constant 2 : index
    %c0_25 = arith.constant 0 : index
    %54 = memref.load %arg2[%c2, %c0_25] : memref<4x9xf32, #tpu.memory_space<smem>>
    %55 = vector.broadcast %54 : f32 to vector<2x16x256xf32>
    %56 = arith.mulf %55, %45 : vector<2x16x256xf32>
    %57 = arith.addf %39, %56 : vector<2x16x256xf32>
    %c3 = arith.constant 3 : index
    %c0_26 = arith.constant 0 : index
    %58 = memref.load %arg2[%c3, %c0_26] : memref<4x9xf32, #tpu.memory_space<smem>>
    %59 = vector.broadcast %58 : f32 to vector<2x16x256xf32>
    %60 = arith.mulf %59, %45 : vector<2x16x256xf32>
    %61 = arith.addf %40, %60 : vector<2x16x256xf32>
    %c16_i32 = arith.constant 16 : i32
    %62 = tpu.dynamic_rotate %36 by %c16_i32 dim 2 : vector<2x16x256xf32>, i32 -> vector<2x16x256xf32>
    %c1_27 = arith.constant 1 : index
    %c0_28 = arith.constant 0 : index
    %63 = vector.load %arg4[%c1_27, %c0_28] : memref<9x256xf32, #tpu.memory_space<vmem>>, vector<1x256xf32>
    %64 = vector.shape_cast %63 : vector<1x256xf32> to vector<1x1x256xf32>
    %65 = vector.broadcast %64 : vector<1x1x256xf32> to vector<2x16x256xf32>
    %66 = arith.mulf %62, %65 : vector<2x16x256xf32>
    %c0_29 = arith.constant 0 : index
    %c1_30 = arith.constant 1 : index
    %67 = memref.load %arg2[%c0_29, %c1_30] : memref<4x9xf32, #tpu.memory_space<smem>>
    %68 = vector.broadcast %67 : f32 to vector<2x16x256xf32>
    %69 = arith.mulf %68, %66 : vector<2x16x256xf32>
    %70 = arith.addf %49, %69 : vector<2x16x256xf32>
    %c1_31 = arith.constant 1 : index
    %c1_32 = arith.constant 1 : index
    %71 = memref.load %arg2[%c1_31, %c1_32] : memref<4x9xf32, #tpu.memory_space<smem>>
    %72 = vector.broadcast %71 : f32 to vector<2x16x256xf32>
    %73 = arith.mulf %72, %66 : vector<2x16x256xf32>
    %74 = arith.addf %53, %73 : vector<2x16x256xf32>
    %c2_33 = arith.constant 2 : index
    %c1_34 = arith.constant 1 : index
    %75 = memref.load %arg2[%c2_33, %c1_34] : memref<4x9xf32, #tpu.memory_space<smem>>
    %76 = vector.broadcast %75 : f32 to vector<2x16x256xf32>
    %77 = arith.mulf %76, %66 : vector<2x16x256xf32>
    %78 = arith.addf %57, %77 : vector<2x16x256xf32>
    %c3_35 = arith.constant 3 : index
    %c1_36 = arith.constant 1 : index
    %79 = memref.load %arg2[%c3_35, %c1_36] : memref<4x9xf32, #tpu.memory_space<smem>>
    %80 = vector.broadcast %79 : f32 to vector<2x16x256xf32>
    %81 = arith.mulf %80, %66 : vector<2x16x256xf32>
    %82 = arith.addf %61, %81 : vector<2x16x256xf32>
    %c15_i32 = arith.constant 15 : i32
    %83 = tpu.dynamic_rotate %36 by %c15_i32 dim 2 : vector<2x16x256xf32>, i32 -> vector<2x16x256xf32>
    %c2_37 = arith.constant 2 : index
    %c0_38 = arith.constant 0 : index
    %84 = vector.load %arg4[%c2_37, %c0_38] : memref<9x256xf32, #tpu.memory_space<vmem>>, vector<1x256xf32>
    %85 = vector.shape_cast %84 : vector<1x256xf32> to vector<1x1x256xf32>
    %86 = vector.broadcast %85 : vector<1x1x256xf32> to vector<2x16x256xf32>
    %87 = arith.mulf %83, %86 : vector<2x16x256xf32>
    %c0_39 = arith.constant 0 : index
    %c2_40 = arith.constant 2 : index
    %88 = memref.load %arg2[%c0_39, %c2_40] : memref<4x9xf32, #tpu.memory_space<smem>>
    %89 = vector.broadcast %88 : f32 to vector<2x16x256xf32>
    %90 = arith.mulf %89, %87 : vector<2x16x256xf32>
    %91 = arith.addf %70, %90 : vector<2x16x256xf32>
    %c1_41 = arith.constant 1 : index
    %c2_42 = arith.constant 2 : index
    %92 = memref.load %arg2[%c1_41, %c2_42] : memref<4x9xf32, #tpu.memory_space<smem>>
    %93 = vector.broadcast %92 : f32 to vector<2x16x256xf32>
    %94 = arith.mulf %93, %87 : vector<2x16x256xf32>
    %95 = arith.addf %74, %94 : vector<2x16x256xf32>
    %c2_43 = arith.constant 2 : index
    %c2_44 = arith.constant 2 : index
    %96 = memref.load %arg2[%c2_43, %c2_44] : memref<4x9xf32, #tpu.memory_space<smem>>
    %97 = vector.broadcast %96 : f32 to vector<2x16x256xf32>
    %98 = arith.mulf %97, %87 : vector<2x16x256xf32>
    %99 = arith.addf %78, %98 : vector<2x16x256xf32>
    %c3_45 = arith.constant 3 : index
    %c2_46 = arith.constant 2 : index
    %100 = memref.load %arg2[%c3_45, %c2_46] : memref<4x9xf32, #tpu.memory_space<smem>>
    %101 = vector.broadcast %100 : f32 to vector<2x16x256xf32>
    %102 = arith.mulf %101, %87 : vector<2x16x256xf32>
    %103 = arith.addf %82, %102 : vector<2x16x256xf32>
    %c1_i32 = arith.constant 1 : i32
    %104 = tpu.dynamic_rotate %36 by %c1_i32 dim 2 : vector<2x16x256xf32>, i32 -> vector<2x16x256xf32>
    %c3_47 = arith.constant 3 : index
    %c0_48 = arith.constant 0 : index
    %105 = vector.load %arg4[%c3_47, %c0_48] : memref<9x256xf32, #tpu.memory_space<vmem>>, vector<1x256xf32>
    %106 = vector.shape_cast %105 : vector<1x256xf32> to vector<1x1x256xf32>
    %107 = vector.broadcast %106 : vector<1x1x256xf32> to vector<2x16x256xf32>
    %108 = arith.mulf %104, %107 : vector<2x16x256xf32>
    %c0_49 = arith.constant 0 : index
    %c3_50 = arith.constant 3 : index
    %109 = memref.load %arg2[%c0_49, %c3_50] : memref<4x9xf32, #tpu.memory_space<smem>>
    %110 = vector.broadcast %109 : f32 to vector<2x16x256xf32>
    %111 = arith.mulf %110, %108 : vector<2x16x256xf32>
    %112 = arith.addf %91, %111 : vector<2x16x256xf32>
    %c1_51 = arith.constant 1 : index
    %c3_52 = arith.constant 3 : index
    %113 = memref.load %arg2[%c1_51, %c3_52] : memref<4x9xf32, #tpu.memory_space<smem>>
    %114 = vector.broadcast %113 : f32 to vector<2x16x256xf32>
    %115 = arith.mulf %114, %108 : vector<2x16x256xf32>
    %116 = arith.addf %95, %115 : vector<2x16x256xf32>
    %c2_53 = arith.constant 2 : index
    %c3_54 = arith.constant 3 : index
    %117 = memref.load %arg2[%c2_53, %c3_54] : memref<4x9xf32, #tpu.memory_space<smem>>
    %118 = vector.broadcast %117 : f32 to vector<2x16x256xf32>
    %119 = arith.mulf %118, %108 : vector<2x16x256xf32>
    %120 = arith.addf %99, %119 : vector<2x16x256xf32>
    %c3_55 = arith.constant 3 : index
    %c3_56 = arith.constant 3 : index
    %121 = memref.load %arg2[%c3_55, %c3_56] : memref<4x9xf32, #tpu.memory_space<smem>>
    %122 = vector.broadcast %121 : f32 to vector<2x16x256xf32>
    %123 = arith.mulf %122, %108 : vector<2x16x256xf32>
    %124 = arith.addf %103, %123 : vector<2x16x256xf32>
    %c4 = arith.constant 4 : index
    %c0_57 = arith.constant 0 : index
    %125 = vector.load %arg4[%c4, %c0_57] : memref<9x256xf32, #tpu.memory_space<vmem>>, vector<1x256xf32>
    %126 = vector.shape_cast %125 : vector<1x256xf32> to vector<1x1x256xf32>
    %127 = vector.broadcast %126 : vector<1x1x256xf32> to vector<2x16x256xf32>
    %128 = arith.mulf %36, %127 : vector<2x16x256xf32>
    %c0_58 = arith.constant 0 : index
    %c4_59 = arith.constant 4 : index
    %129 = memref.load %arg2[%c0_58, %c4_59] : memref<4x9xf32, #tpu.memory_space<smem>>
    %130 = vector.broadcast %129 : f32 to vector<2x16x256xf32>
    %131 = arith.mulf %130, %128 : vector<2x16x256xf32>
    %132 = arith.addf %112, %131 : vector<2x16x256xf32>
    %c1_60 = arith.constant 1 : index
    %c4_61 = arith.constant 4 : index
    %133 = memref.load %arg2[%c1_60, %c4_61] : memref<4x9xf32, #tpu.memory_space<smem>>
    %134 = vector.broadcast %133 : f32 to vector<2x16x256xf32>
    %135 = arith.mulf %134, %128 : vector<2x16x256xf32>
    %136 = arith.addf %116, %135 : vector<2x16x256xf32>
    %c2_62 = arith.constant 2 : index
    %c4_63 = arith.constant 4 : index
    %137 = memref.load %arg2[%c2_62, %c4_63] : memref<4x9xf32, #tpu.memory_space<smem>>
    %138 = vector.broadcast %137 : f32 to vector<2x16x256xf32>
    %139 = arith.mulf %138, %128 : vector<2x16x256xf32>
    %140 = arith.addf %120, %139 : vector<2x16x256xf32>
    %c3_64 = arith.constant 3 : index
    %c4_65 = arith.constant 4 : index
    %141 = memref.load %arg2[%c3_64, %c4_65] : memref<4x9xf32, #tpu.memory_space<smem>>
    %142 = vector.broadcast %141 : f32 to vector<2x16x256xf32>
    %143 = arith.mulf %142, %128 : vector<2x16x256xf32>
    %144 = arith.addf %124, %143 : vector<2x16x256xf32>
    %c255_i32 = arith.constant 255 : i32
    %145 = tpu.dynamic_rotate %36 by %c255_i32 dim 2 : vector<2x16x256xf32>, i32 -> vector<2x16x256xf32>
    %c5 = arith.constant 5 : index
    %c0_66 = arith.constant 0 : index
    %146 = vector.load %arg4[%c5, %c0_66] : memref<9x256xf32, #tpu.memory_space<vmem>>, vector<1x256xf32>
    %147 = vector.shape_cast %146 : vector<1x256xf32> to vector<1x1x256xf32>
    %148 = vector.broadcast %147 : vector<1x1x256xf32> to vector<2x16x256xf32>
    %149 = arith.mulf %145, %148 : vector<2x16x256xf32>
    %c0_67 = arith.constant 0 : index
    %c5_68 = arith.constant 5 : index
    %150 = memref.load %arg2[%c0_67, %c5_68] : memref<4x9xf32, #tpu.memory_space<smem>>
    %151 = vector.broadcast %150 : f32 to vector<2x16x256xf32>
    %152 = arith.mulf %151, %149 : vector<2x16x256xf32>
    %153 = arith.addf %132, %152 : vector<2x16x256xf32>
    %c1_69 = arith.constant 1 : index
    %c5_70 = arith.constant 5 : index
    %154 = memref.load %arg2[%c1_69, %c5_70] : memref<4x9xf32, #tpu.memory_space<smem>>
    %155 = vector.broadcast %154 : f32 to vector<2x16x256xf32>
    %156 = arith.mulf %155, %149 : vector<2x16x256xf32>
    %157 = arith.addf %136, %156 : vector<2x16x256xf32>
    %c2_71 = arith.constant 2 : index
    %c5_72 = arith.constant 5 : index
    %158 = memref.load %arg2[%c2_71, %c5_72] : memref<4x9xf32, #tpu.memory_space<smem>>
    %159 = vector.broadcast %158 : f32 to vector<2x16x256xf32>
    %160 = arith.mulf %159, %149 : vector<2x16x256xf32>
    %161 = arith.addf %140, %160 : vector<2x16x256xf32>
    %c3_73 = arith.constant 3 : index
    %c5_74 = arith.constant 5 : index
    %162 = memref.load %arg2[%c3_73, %c5_74] : memref<4x9xf32, #tpu.memory_space<smem>>
    %163 = vector.broadcast %162 : f32 to vector<2x16x256xf32>
    %164 = arith.mulf %163, %149 : vector<2x16x256xf32>
    %165 = arith.addf %144, %164 : vector<2x16x256xf32>
    %c241_i32 = arith.constant 241 : i32
    %166 = tpu.dynamic_rotate %36 by %c241_i32 dim 2 : vector<2x16x256xf32>, i32 -> vector<2x16x256xf32>
    %c6 = arith.constant 6 : index
    %c0_75 = arith.constant 0 : index
    %167 = vector.load %arg4[%c6, %c0_75] : memref<9x256xf32, #tpu.memory_space<vmem>>, vector<1x256xf32>
    %168 = vector.shape_cast %167 : vector<1x256xf32> to vector<1x1x256xf32>
    %169 = vector.broadcast %168 : vector<1x1x256xf32> to vector<2x16x256xf32>
    %170 = arith.mulf %166, %169 : vector<2x16x256xf32>
    %c0_76 = arith.constant 0 : index
    %c6_77 = arith.constant 6 : index
    %171 = memref.load %arg2[%c0_76, %c6_77] : memref<4x9xf32, #tpu.memory_space<smem>>
    %172 = vector.broadcast %171 : f32 to vector<2x16x256xf32>
    %173 = arith.mulf %172, %170 : vector<2x16x256xf32>
    %174 = arith.addf %153, %173 : vector<2x16x256xf32>
    %c1_78 = arith.constant 1 : index
    %c6_79 = arith.constant 6 : index
    %175 = memref.load %arg2[%c1_78, %c6_79] : memref<4x9xf32, #tpu.memory_space<smem>>
    %176 = vector.broadcast %175 : f32 to vector<2x16x256xf32>
    %177 = arith.mulf %176, %170 : vector<2x16x256xf32>
    %178 = arith.addf %157, %177 : vector<2x16x256xf32>
    %c2_80 = arith.constant 2 : index
    %c6_81 = arith.constant 6 : index
    %179 = memref.load %arg2[%c2_80, %c6_81] : memref<4x9xf32, #tpu.memory_space<smem>>
    %180 = vector.broadcast %179 : f32 to vector<2x16x256xf32>
    %181 = arith.mulf %180, %170 : vector<2x16x256xf32>
    %182 = arith.addf %161, %181 : vector<2x16x256xf32>
    %c3_82 = arith.constant 3 : index
    %c6_83 = arith.constant 6 : index
    %183 = memref.load %arg2[%c3_82, %c6_83] : memref<4x9xf32, #tpu.memory_space<smem>>
    %184 = vector.broadcast %183 : f32 to vector<2x16x256xf32>
    %185 = arith.mulf %184, %170 : vector<2x16x256xf32>
    %186 = arith.addf %165, %185 : vector<2x16x256xf32>
    %c240_i32 = arith.constant 240 : i32
    %187 = tpu.dynamic_rotate %36 by %c240_i32 dim 2 : vector<2x16x256xf32>, i32 -> vector<2x16x256xf32>
    %c7 = arith.constant 7 : index
    %c0_84 = arith.constant 0 : index
    %188 = vector.load %arg4[%c7, %c0_84] : memref<9x256xf32, #tpu.memory_space<vmem>>, vector<1x256xf32>
    %189 = vector.shape_cast %188 : vector<1x256xf32> to vector<1x1x256xf32>
    %190 = vector.broadcast %189 : vector<1x1x256xf32> to vector<2x16x256xf32>
    %191 = arith.mulf %187, %190 : vector<2x16x256xf32>
    %c0_85 = arith.constant 0 : index
    %c7_86 = arith.constant 7 : index
    %192 = memref.load %arg2[%c0_85, %c7_86] : memref<4x9xf32, #tpu.memory_space<smem>>
    %193 = vector.broadcast %192 : f32 to vector<2x16x256xf32>
    %194 = arith.mulf %193, %191 : vector<2x16x256xf32>
    %195 = arith.addf %174, %194 : vector<2x16x256xf32>
    %c1_87 = arith.constant 1 : index
    %c7_88 = arith.constant 7 : index
    %196 = memref.load %arg2[%c1_87, %c7_88] : memref<4x9xf32, #tpu.memory_space<smem>>
    %197 = vector.broadcast %196 : f32 to vector<2x16x256xf32>
    %198 = arith.mulf %197, %191 : vector<2x16x256xf32>
    %199 = arith.addf %178, %198 : vector<2x16x256xf32>
    %c2_89 = arith.constant 2 : index
    %c7_90 = arith.constant 7 : index
    %200 = memref.load %arg2[%c2_89, %c7_90] : memref<4x9xf32, #tpu.memory_space<smem>>
    %201 = vector.broadcast %200 : f32 to vector<2x16x256xf32>
    %202 = arith.mulf %201, %191 : vector<2x16x256xf32>
    %203 = arith.addf %182, %202 : vector<2x16x256xf32>
    %c3_91 = arith.constant 3 : index
    %c7_92 = arith.constant 7 : index
    %204 = memref.load %arg2[%c3_91, %c7_92] : memref<4x9xf32, #tpu.memory_space<smem>>
    %205 = vector.broadcast %204 : f32 to vector<2x16x256xf32>
    %206 = arith.mulf %205, %191 : vector<2x16x256xf32>
    %207 = arith.addf %186, %206 : vector<2x16x256xf32>
    %c239_i32 = arith.constant 239 : i32
    %208 = tpu.dynamic_rotate %36 by %c239_i32 dim 2 : vector<2x16x256xf32>, i32 -> vector<2x16x256xf32>
    %c8 = arith.constant 8 : index
    %c0_93 = arith.constant 0 : index
    %209 = vector.load %arg4[%c8, %c0_93] : memref<9x256xf32, #tpu.memory_space<vmem>>, vector<1x256xf32>
    %210 = vector.shape_cast %209 : vector<1x256xf32> to vector<1x1x256xf32>
    %211 = vector.broadcast %210 : vector<1x1x256xf32> to vector<2x16x256xf32>
    %212 = arith.mulf %208, %211 : vector<2x16x256xf32>
    %c0_94 = arith.constant 0 : index
    %c8_95 = arith.constant 8 : index
    %213 = memref.load %arg2[%c0_94, %c8_95] : memref<4x9xf32, #tpu.memory_space<smem>>
    %214 = vector.broadcast %213 : f32 to vector<2x16x256xf32>
    %215 = arith.mulf %214, %212 : vector<2x16x256xf32>
    %216 = arith.addf %195, %215 : vector<2x16x256xf32>
    %c1_96 = arith.constant 1 : index
    %c8_97 = arith.constant 8 : index
    %217 = memref.load %arg2[%c1_96, %c8_97] : memref<4x9xf32, #tpu.memory_space<smem>>
    %218 = vector.broadcast %217 : f32 to vector<2x16x256xf32>
    %219 = arith.mulf %218, %212 : vector<2x16x256xf32>
    %220 = arith.addf %199, %219 : vector<2x16x256xf32>
    %c2_98 = arith.constant 2 : index
    %c8_99 = arith.constant 8 : index
    %221 = memref.load %arg2[%c2_98, %c8_99] : memref<4x9xf32, #tpu.memory_space<smem>>
    %222 = vector.broadcast %221 : f32 to vector<2x16x256xf32>
    %223 = arith.mulf %222, %212 : vector<2x16x256xf32>
    %224 = arith.addf %203, %223 : vector<2x16x256xf32>
    %c3_100 = arith.constant 3 : index
    %c8_101 = arith.constant 8 : index
    %225 = memref.load %arg2[%c3_100, %c8_101] : memref<4x9xf32, #tpu.memory_space<smem>>
    %226 = vector.broadcast %225 : f32 to vector<2x16x256xf32>
    %227 = arith.mulf %226, %212 : vector<2x16x256xf32>
    %228 = arith.addf %207, %227 : vector<2x16x256xf32>
    %cst_102 = arith.constant 0.000000e+00 : f32
    %229 = vector.broadcast %cst_102 : f32 to vector<2x16x256xf32>
    %cst_103 = arith.constant dense<0.000000e+00> : vector<2x16xf32>
    %230 = vector.multi_reduction <add>, %216, %cst_103 [2] : vector<2x16x256xf32> to vector<2x16xf32>
    %231 = vector.shape_cast %230 : vector<2x16xf32> to vector<2x16x1xf32>
    %cst_104 = arith.constant dense<0.000000e+00> : vector<16x1xf32>
    %232 = vector.multi_reduction <add>, %231, %cst_104 [0] : vector<2x16x1xf32> to vector<16x1xf32>
    %233 = vector.shape_cast %232 : vector<16x1xf32> to vector<1x16x1xf32>
    %cst_105 = arith.constant 0.001953125 : f32
    %234 = vector.broadcast %cst_105 : f32 to vector<1x16x1xf32>
    %235 = arith.mulf %233, %234 : vector<1x16x1xf32>
    %236 = vector.broadcast %235 : vector<1x16x1xf32> to vector<2x16x256xf32>
    %237 = arith.subf %216, %236 : vector<2x16x256xf32>
    %238 = arith.mulf %237, %237 : vector<2x16x256xf32>
    %cst_106 = arith.constant dense<0.000000e+00> : vector<2x16xf32>
    %239 = vector.multi_reduction <add>, %238, %cst_106 [2] : vector<2x16x256xf32> to vector<2x16xf32>
    %240 = vector.shape_cast %239 : vector<2x16xf32> to vector<2x16x1xf32>
    %cst_107 = arith.constant dense<0.000000e+00> : vector<16x1xf32>
    %241 = vector.multi_reduction <add>, %240, %cst_107 [0] : vector<2x16x1xf32> to vector<16x1xf32>
    %242 = vector.shape_cast %241 : vector<16x1xf32> to vector<1x16x1xf32>
    %cst_108 = arith.constant 0.001953125 : f32
    %243 = vector.broadcast %cst_108 : f32 to vector<1x16x1xf32>
    %244 = arith.mulf %242, %243 : vector<1x16x1xf32>
    %cst_109 = arith.constant 9.99999974E-6 : f32
    %245 = vector.broadcast %cst_109 : f32 to vector<1x16x1xf32>
    %246 = arith.addf %244, %245 : vector<1x16x1xf32>
    %247 = math.rsqrt %246 : vector<1x16x1xf32>
    %248 = vector.broadcast %247 : vector<1x16x1xf32> to vector<2x16x256xf32>
    %249 = arith.mulf %237, %248 : vector<2x16x256xf32>
    %cst_110 = arith.constant 0.000000e+00 : f32
    %250 = vector.broadcast %cst_110 : f32 to vector<2x16x256xf32>
    %251 = arith.maximumf %249, %250 : vector<2x16x256xf32>
    %c0_111 = arith.constant 0 : index
    %c0_112 = arith.constant 0 : index
    %c0_113 = arith.constant 0 : index
    %252 = vector.load %arg3[%c0_111, %c0_112, %c0_113] : memref<4x16x16xf32, #tpu.memory_space<vmem>>, vector<1x16x16xf32>
    %253 = vector.shape_cast %252 : vector<1x16x16xf32> to vector<16x16xf32>
    %254 = vector.shape_cast %253 : vector<16x16xf32> to vector<1x16x16xf32>
    %255 = vector.shape_cast %254 : vector<1x16x16xf32> to vector<1x16x16xf32>
    %256 = vector.broadcast %255 : vector<1x16x16xf32> to vector<2x16x16xf32>
    %cst_114 = arith.constant dense<0.000000e+00> : vector<2x16x256xf32>
    %257 = tpu.matmul %256, %251, %cst_114 {dimension_numbers = #tpu.dot_dimension_numbers<[2], [1], [1], [2], [0, 0, 0, 1, 1, 2], [0], [0]>} : vector<2x16x16xf32>, vector<2x16x256xf32>, vector<2x16x256xf32> -> vector<2x16x256xf32>
    %258 = arith.addf %229, %257 : vector<2x16x256xf32>
    %cst_115 = arith.constant dense<0.000000e+00> : vector<2x16xf32>
    %259 = vector.multi_reduction <add>, %220, %cst_115 [2] : vector<2x16x256xf32> to vector<2x16xf32>
    %260 = vector.shape_cast %259 : vector<2x16xf32> to vector<2x16x1xf32>
    %cst_116 = arith.constant dense<0.000000e+00> : vector<16x1xf32>
    %261 = vector.multi_reduction <add>, %260, %cst_116 [0] : vector<2x16x1xf32> to vector<16x1xf32>
    %262 = vector.shape_cast %261 : vector<16x1xf32> to vector<1x16x1xf32>
    %cst_117 = arith.constant 0.001953125 : f32
    %263 = vector.broadcast %cst_117 : f32 to vector<1x16x1xf32>
    %264 = arith.mulf %262, %263 : vector<1x16x1xf32>
    %265 = vector.broadcast %264 : vector<1x16x1xf32> to vector<2x16x256xf32>
    %266 = arith.subf %220, %265 : vector<2x16x256xf32>
    %267 = arith.mulf %266, %266 : vector<2x16x256xf32>
    %cst_118 = arith.constant dense<0.000000e+00> : vector<2x16xf32>
    %268 = vector.multi_reduction <add>, %267, %cst_118 [2] : vector<2x16x256xf32> to vector<2x16xf32>
    %269 = vector.shape_cast %268 : vector<2x16xf32> to vector<2x16x1xf32>
    %cst_119 = arith.constant dense<0.000000e+00> : vector<16x1xf32>
    %270 = vector.multi_reduction <add>, %269, %cst_119 [0] : vector<2x16x1xf32> to vector<16x1xf32>
    %271 = vector.shape_cast %270 : vector<16x1xf32> to vector<1x16x1xf32>
    %cst_120 = arith.constant 0.001953125 : f32
    %272 = vector.broadcast %cst_120 : f32 to vector<1x16x1xf32>
    %273 = arith.mulf %271, %272 : vector<1x16x1xf32>
    %cst_121 = arith.constant 9.99999974E-6 : f32
    %274 = vector.broadcast %cst_121 : f32 to vector<1x16x1xf32>
    %275 = arith.addf %273, %274 : vector<1x16x1xf32>
    %276 = math.rsqrt %275 : vector<1x16x1xf32>
    %277 = vector.broadcast %276 : vector<1x16x1xf32> to vector<2x16x256xf32>
    %278 = arith.mulf %266, %277 : vector<2x16x256xf32>
    %cst_122 = arith.constant 0.000000e+00 : f32
    %279 = vector.broadcast %cst_122 : f32 to vector<2x16x256xf32>
    %280 = arith.maximumf %278, %279 : vector<2x16x256xf32>
    %c1_123 = arith.constant 1 : index
    %c0_124 = arith.constant 0 : index
    %c0_125 = arith.constant 0 : index
    %281 = vector.load %arg3[%c1_123, %c0_124, %c0_125] : memref<4x16x16xf32, #tpu.memory_space<vmem>>, vector<1x16x16xf32>
    %282 = vector.shape_cast %281 : vector<1x16x16xf32> to vector<16x16xf32>
    %283 = vector.shape_cast %282 : vector<16x16xf32> to vector<1x16x16xf32>
    %284 = vector.shape_cast %283 : vector<1x16x16xf32> to vector<1x16x16xf32>
    %285 = vector.broadcast %284 : vector<1x16x16xf32> to vector<2x16x16xf32>
    %cst_126 = arith.constant dense<0.000000e+00> : vector<2x16x256xf32>
    %286 = tpu.matmul %285, %280, %cst_126 {dimension_numbers = #tpu.dot_dimension_numbers<[2], [1], [1], [2], [0, 0, 0, 1, 1, 2], [0], [0]>} : vector<2x16x16xf32>, vector<2x16x256xf32>, vector<2x16x256xf32> -> vector<2x16x256xf32>
    %287 = arith.addf %258, %286 : vector<2x16x256xf32>
    %cst_127 = arith.constant dense<0.000000e+00> : vector<2x16xf32>
    %288 = vector.multi_reduction <add>, %224, %cst_127 [2] : vector<2x16x256xf32> to vector<2x16xf32>
    %289 = vector.shape_cast %288 : vector<2x16xf32> to vector<2x16x1xf32>
    %cst_128 = arith.constant dense<0.000000e+00> : vector<16x1xf32>
    %290 = vector.multi_reduction <add>, %289, %cst_128 [0] : vector<2x16x1xf32> to vector<16x1xf32>
    %291 = vector.shape_cast %290 : vector<16x1xf32> to vector<1x16x1xf32>
    %cst_129 = arith.constant 0.001953125 : f32
    %292 = vector.broadcast %cst_129 : f32 to vector<1x16x1xf32>
    %293 = arith.mulf %291, %292 : vector<1x16x1xf32>
    %294 = vector.broadcast %293 : vector<1x16x1xf32> to vector<2x16x256xf32>
    %295 = arith.subf %224, %294 : vector<2x16x256xf32>
    %296 = arith.mulf %295, %295 : vector<2x16x256xf32>
    %cst_130 = arith.constant dense<0.000000e+00> : vector<2x16xf32>
    %297 = vector.multi_reduction <add>, %296, %cst_130 [2] : vector<2x16x256xf32> to vector<2x16xf32>
    %298 = vector.shape_cast %297 : vector<2x16xf32> to vector<2x16x1xf32>
    %cst_131 = arith.constant dense<0.000000e+00> : vector<16x1xf32>
    %299 = vector.multi_reduction <add>, %298, %cst_131 [0] : vector<2x16x1xf32> to vector<16x1xf32>
    %300 = vector.shape_cast %299 : vector<16x1xf32> to vector<1x16x1xf32>
    %cst_132 = arith.constant 0.001953125 : f32
    %301 = vector.broadcast %cst_132 : f32 to vector<1x16x1xf32>
    %302 = arith.mulf %300, %301 : vector<1x16x1xf32>
    %cst_133 = arith.constant 9.99999974E-6 : f32
    %303 = vector.broadcast %cst_133 : f32 to vector<1x16x1xf32>
    %304 = arith.addf %302, %303 : vector<1x16x1xf32>
    %305 = math.rsqrt %304 : vector<1x16x1xf32>
    %306 = vector.broadcast %305 : vector<1x16x1xf32> to vector<2x16x256xf32>
    %307 = arith.mulf %295, %306 : vector<2x16x256xf32>
    %cst_134 = arith.constant 0.000000e+00 : f32
    %308 = vector.broadcast %cst_134 : f32 to vector<2x16x256xf32>
    %309 = arith.maximumf %307, %308 : vector<2x16x256xf32>
    %c2_135 = arith.constant 2 : index
    %c0_136 = arith.constant 0 : index
    %c0_137 = arith.constant 0 : index
    %310 = vector.load %arg3[%c2_135, %c0_136, %c0_137] : memref<4x16x16xf32, #tpu.memory_space<vmem>>, vector<1x16x16xf32>
    %311 = vector.shape_cast %310 : vector<1x16x16xf32> to vector<16x16xf32>
    %312 = vector.shape_cast %311 : vector<16x16xf32> to vector<1x16x16xf32>
    %313 = vector.shape_cast %312 : vector<1x16x16xf32> to vector<1x16x16xf32>
    %314 = vector.broadcast %313 : vector<1x16x16xf32> to vector<2x16x16xf32>
    %cst_138 = arith.constant dense<0.000000e+00> : vector<2x16x256xf32>
    %315 = tpu.matmul %314, %309, %cst_138 {dimension_numbers = #tpu.dot_dimension_numbers<[2], [1], [1], [2], [0, 0, 0, 1, 1, 2], [0], [0]>} : vector<2x16x16xf32>, vector<2x16x256xf32>, vector<2x16x256xf32> -> vector<2x16x256xf32>
    %316 = arith.addf %287, %315 : vector<2x16x256xf32>
    %cst_139 = arith.constant dense<0.000000e+00> : vector<2x16xf32>
    %317 = vector.multi_reduction <add>, %228, %cst_139 [2] : vector<2x16x256xf32> to vector<2x16xf32>
    %318 = vector.shape_cast %317 : vector<2x16xf32> to vector<2x16x1xf32>
    %cst_140 = arith.constant dense<0.000000e+00> : vector<16x1xf32>
    %319 = vector.multi_reduction <add>, %318, %cst_140 [0] : vector<2x16x1xf32> to vector<16x1xf32>
    %320 = vector.shape_cast %319 : vector<16x1xf32> to vector<1x16x1xf32>
    %cst_141 = arith.constant 0.001953125 : f32
    %321 = vector.broadcast %cst_141 : f32 to vector<1x16x1xf32>
    %322 = arith.mulf %320, %321 : vector<1x16x1xf32>
    %323 = vector.broadcast %322 : vector<1x16x1xf32> to vector<2x16x256xf32>
    %324 = arith.subf %228, %323 : vector<2x16x256xf32>
    %325 = arith.mulf %324, %324 : vector<2x16x256xf32>
    %cst_142 = arith.constant dense<0.000000e+00> : vector<2x16xf32>
    %326 = vector.multi_reduction <add>, %325, %cst_142 [2] : vector<2x16x256xf32> to vector<2x16xf32>
    %327 = vector.shape_cast %326 : vector<2x16xf32> to vector<2x16x1xf32>
    %cst_143 = arith.constant dense<0.000000e+00> : vector<16x1xf32>
    %328 = vector.multi_reduction <add>, %327, %cst_143 [0] : vector<2x16x1xf32> to vector<16x1xf32>
    %329 = vector.shape_cast %328 : vector<16x1xf32> to vector<1x16x1xf32>
    %cst_144 = arith.constant 0.001953125 : f32
    %330 = vector.broadcast %cst_144 : f32 to vector<1x16x1xf32>
    %331 = arith.mulf %329, %330 : vector<1x16x1xf32>
    %cst_145 = arith.constant 9.99999974E-6 : f32
    %332 = vector.broadcast %cst_145 : f32 to vector<1x16x1xf32>
    %333 = arith.addf %331, %332 : vector<1x16x1xf32>
    %334 = math.rsqrt %333 : vector<1x16x1xf32>
    %335 = vector.broadcast %334 : vector<1x16x1xf32> to vector<2x16x256xf32>
    %336 = arith.mulf %324, %335 : vector<2x16x256xf32>
    %cst_146 = arith.constant 0.000000e+00 : f32
    %337 = vector.broadcast %cst_146 : f32 to vector<2x16x256xf32>
    %338 = arith.maximumf %336, %337 : vector<2x16x256xf32>
    %c3_147 = arith.constant 3 : index
    %c0_148 = arith.constant 0 : index
    %c0_149 = arith.constant 0 : index
    %339 = vector.load %arg3[%c3_147, %c0_148, %c0_149] : memref<4x16x16xf32, #tpu.memory_space<vmem>>, vector<1x16x16xf32>
    %340 = vector.shape_cast %339 : vector<1x16x16xf32> to vector<16x16xf32>
    %341 = vector.shape_cast %340 : vector<16x16xf32> to vector<1x16x16xf32>
    %342 = vector.shape_cast %341 : vector<1x16x16xf32> to vector<1x16x16xf32>
    %343 = vector.broadcast %342 : vector<1x16x16xf32> to vector<2x16x16xf32>
    %cst_150 = arith.constant dense<0.000000e+00> : vector<2x16x256xf32>
    %344 = tpu.matmul %343, %338, %cst_150 {dimension_numbers = #tpu.dot_dimension_numbers<[2], [1], [1], [2], [0, 0, 0, 1, 1, 2], [0], [0]>} : vector<2x16x16xf32>, vector<2x16x256xf32>, vector<2x16x256xf32> -> vector<2x16x256xf32>
    %345 = arith.addf %316, %344 : vector<2x16x256xf32>
    %cst_151 = arith.constant dense<0.000000e+00> : vector<2x16xf32>
    %346 = vector.multi_reduction <add>, %345, %cst_151 [2] : vector<2x16x256xf32> to vector<2x16xf32>
    %347 = vector.shape_cast %346 : vector<2x16xf32> to vector<2x16x1xf32>
    %cst_152 = arith.constant dense<0.000000e+00> : vector<16x1xf32>
    %348 = vector.multi_reduction <add>, %347, %cst_152 [0] : vector<2x16x1xf32> to vector<16x1xf32>
    %349 = vector.shape_cast %348 : vector<16x1xf32> to vector<1x16x1xf32>
    %cst_153 = arith.constant 0.001953125 : f32
    %350 = vector.broadcast %cst_153 : f32 to vector<1x16x1xf32>
    %351 = arith.mulf %349, %350 : vector<1x16x1xf32>
    %352 = vector.broadcast %351 : vector<1x16x1xf32> to vector<2x16x256xf32>
    %353 = arith.subf %345, %352 : vector<2x16x256xf32>
    %354 = arith.mulf %353, %353 : vector<2x16x256xf32>
    %cst_154 = arith.constant dense<0.000000e+00> : vector<2x16xf32>
    %355 = vector.multi_reduction <add>, %354, %cst_154 [2] : vector<2x16x256xf32> to vector<2x16xf32>
    %356 = vector.shape_cast %355 : vector<2x16xf32> to vector<2x16x1xf32>
    %cst_155 = arith.constant dense<0.000000e+00> : vector<16x1xf32>
    %357 = vector.multi_reduction <add>, %356, %cst_155 [0] : vector<2x16x1xf32> to vector<16x1xf32>
    %358 = vector.shape_cast %357 : vector<16x1xf32> to vector<1x16x1xf32>
    %cst_156 = arith.constant 0.001953125 : f32
    %359 = vector.broadcast %cst_156 : f32 to vector<1x16x1xf32>
    %360 = arith.mulf %358, %359 : vector<1x16x1xf32>
    %cst_157 = arith.constant 9.99999974E-6 : f32
    %361 = vector.broadcast %cst_157 : f32 to vector<1x16x1xf32>
    %362 = arith.addf %360, %361 : vector<1x16x1xf32>
    %363 = math.rsqrt %362 : vector<1x16x1xf32>
    %364 = vector.broadcast %363 : vector<1x16x1xf32> to vector<2x16x256xf32>
    %365 = arith.mulf %353, %364 : vector<2x16x256xf32>
    %366 = arith.addf %0, %365 : vector<2x16x256xf32>
    %cst_158 = arith.constant 9.99999974E-5 : f32
    %367 = vector.broadcast %cst_158 : f32 to vector<2x16x256xf32>
    %368 = arith.cmpf ogt, %366, %367 : vector<2x16x256xf32>
    %cst_159 = arith.constant 9.99999974E-5 : f32
    %369 = vector.broadcast %cst_159 : f32 to vector<2x16x256xf32>
    %370 = arith.subf %366, %369 : vector<2x16x256xf32>
    %cst_160 = arith.constant -9.99999974E-5 : f32
    %371 = vector.broadcast %cst_160 : f32 to vector<2x16x256xf32>
    %372 = arith.cmpf olt, %366, %371 : vector<2x16x256xf32>
    %cst_161 = arith.constant 9.99999974E-5 : f32
    %373 = vector.broadcast %cst_161 : f32 to vector<2x16x256xf32>
    %374 = arith.addf %366, %373 : vector<2x16x256xf32>
    %cst_162 = arith.constant 0.000000e+00 : f32
    %375 = vector.broadcast %cst_162 : f32 to vector<2x16x256xf32>
    %376 = arith.select %372, %374, %375 : vector<2x16x256xi1>, vector<2x16x256xf32>
    %377 = arith.select %368, %370, %376 : vector<2x16x256xi1>, vector<2x16x256xf32>
    %c0_163 = arith.constant 0 : index
    %c0_164 = arith.constant 0 : index
    %c0_165 = arith.constant 0 : index
    %378 = vector.load %arg5[%c0_163, %c0_164, %c0_165] : memref<2x16x256xf32, #tpu.memory_space<vmem>>, vector<2x16x256xf32>
    tpu.vector_store %arg5[%c0_163, %c0_164, %c0_165], %377 {strides = array<i32>} : memref<2x16x256xf32, #tpu.memory_space<vmem>>, vector<2x16x256xf32>,
    return
  }
}

</mosaic_0001>

<llo_original>
// kernel: tpu_custom_call.1
$region0: #{tpu_custom_call.1}
  #allocation0 [shape = 'u32[]', space=smem, size = 0x4, offset = 0x4, fixed_abs, tag = 'smem constant byte address 0x4 - core index']
  #allocation1 [shape = 'u32[144,128]{1,0:T(1,128)}', space=vmem, size = 0x12000, scoped, tag = 'internal scratch']
  %s0 = inlined_call_operand.hbm [shape: f32[2,16,256], index: 0, kind: input, shape index: {}]
  %s1 = inlined_call_operand.hbm [shape: f32[16,16], index: 1, kind: input, shape index: {}]
  %s2 = inlined_call_operand.hbm [shape: f32[4,9], index: 2, kind: input, shape index: {}]
  %s3 = inlined_call_operand.hbm [shape: f32[4,16,16], index: 3, kind: input, shape index: {}]
  %s4 = inlined_call_operand.hbm [shape: f32[9,256], index: 4, kind: input, shape index: {}]
  %s5 = inlined_call_operand.hbm [shape: f32[2,16,256], index: 5, kind: output, shape index: {}]
  %s6 = sld [smem:[#allocation0]]
  $region50: #{tpu_custom_call.1} parent=0
    _
  %s8 = ssub.s32 1, %s6
  %s9 = scalar_select 0, %s8, %s6
  $region1: #{tpu_custom_call.1} parent=0
    #allocation2 [shape = 'u8[32768]{0}', space=vmem, size = 0x8000, scoped, tag = 'input window, operand 0, single buffered']
    #allocation3 [shape = 's32[1]{0}', space=sflag, size = 0x4, scoped, tag = 'scoped memory for tpu_custom_call.1']
    #allocation4 [shape = 's32[1]{0}', space=sflag, size = 0x4, scoped, tag = 'scoped memory for tpu_custom_call.1']
    #allocation5 [shape = 's32[1]{0}', space=sflag, size = 0x4, scoped, tag = 'scoped memory for tpu_custom_call.1']
    #allocation6 [shape = 'u8[8192]{0}', space=vmem, size = 0x2000, scoped, tag = 'input window, operand 1, single buffered']
    #allocation7 [shape = 's32[1]{0}', space=sflag, size = 0x4, scoped, tag = 'scoped memory for tpu_custom_call.1']
    #allocation8 [shape = 'u8[2048]{0}', space=smem, size = 0x800, scoped, tag = 'input window, operand 2, single buffered']
    #allocation9 [shape = 'u8[32768]{0}', space=vmem, size = 0x8000, scoped, tag = 'input window, operand 3, single buffered']
    #allocation10 [shape = 'u8[16384]{0}', space=vmem, size = 0x4000, scoped, tag = 'input window, operand 4, single buffered']
    #allocation11 [shape = 's32[1]{0}', space=sflag, size = 0x4, scoped, tag = 'scoped memory for tpu_custom_call.1']
    #allocation12 [shape = 'u8[32768]{0}', space=vmem, size = 0x8000, scoped, tag = 'output window, operand 0, single buffered']
    %10 = vsyncpa [#allocation3], 0
    %11 = vsyncpa [#allocation7], 0
    %12 = vsyncpa [#allocation5], 0
    %13 = vsyncpa [#allocation11], 0
    %14 = vsyncpa [#allocation4], 0
    // Predicated region
    $region2: #{tpu_custom_call.1} parent=1 // pred_check
      _
    $region3: #{tpu_custom_call.1} parent=1 // pred_check_branch
      %16 = sbr.rel (0) target = $region5
    $region4: #{tpu_custom_call.1} parent=1 // pred_region
      %s18 = ssub.s32 1024, 1024
      %19 = vsyncadd [#allocation3], %s18
      %s20 = sshll.u32 [#allocation2], 4
      %s21 = int_to_ptr.vmem [resolvable:$true] %s20
      %26 = dma.hbm_to_vmem [thread:$0]  %s0, 1024, %s21, [#allocation3], 256, 256, 16
    $region5: #{tpu_custom_call.1} parent=1 // pred_fallthru
      _
    // Predicated region
    $region6: #{tpu_custom_call.1} parent=1 // pred_check
      _
    $region7: #{tpu_custom_call.1} parent=1 // pred_check_branch
      %28 = sbr.rel (0) target = $region9
    $region8: #{tpu_custom_call.1} parent=1 // pred_region
      %s30 = ssub.s32 256, 256
      %31 = vsyncadd [#allocation7], %s30
      %s32 = sshll.u32 [#allocation6], 4
      %s33 = int_to_ptr.vmem [resolvable:$true] %s32
      %38 = dma.hbm_to_vmem [thread:$0]  %s1, 256, %s33, [#allocation7], 128, 128, 8
    $region9: #{tpu_custom_call.1} parent=1 // pred_fallthru
      _
    // Predicated region
    $region10: #{tpu_custom_call.1} parent=1 // pred_check
      _
    $region11: #{tpu_custom_call.1} parent=1 // pred_check_branch
      %40 = sbr.rel (0) target = $region13
    $region12: #{tpu_custom_call.1} parent=1 // pred_region
      %s42 = ssub.s32 64, 64
      %43 = vsyncadd [#allocation5], %s42
      %46 = dma.hbm_to_smem %s2, 64, [#allocation8], [#allocation5]
    $region13: #{tpu_custom_call.1} parent=1 // pred_fallthru
      _
    // Predicated region
    $region14: #{tpu_custom_call.1} parent=1 // pred_check
      _
    $region15: #{tpu_custom_call.1} parent=1 // pred_check_branch
      %48 = sbr.rel (0) target = $region17
    $region16: #{tpu_custom_call.1} parent=1 // pred_region
      %s50 = ssub.s32 1024, 1024
      %51 = vsyncadd [#allocation7], %s50
      %s52 = sshll.u32 [#allocation9], 4
      %s53 = int_to_ptr.vmem [resolvable:$true] %s52
      %58 = dma.hbm_to_vmem [thread:$0]  %s3, 1024, %s53, [#allocation7], 128, 128, 8
    $region17: #{tpu_custom_call.1} parent=1 // pred_fallthru
      _
    // Predicated region
    $region18: #{tpu_custom_call.1} parent=1 // pred_check
      _
    $region19: #{tpu_custom_call.1} parent=1 // pred_check_branch
      %60 = sbr.rel (0) target = $region21
    $region20: #{tpu_custom_call.1} parent=1 // pred_region
      %s62 = ssub.s32 512, 512
      %63 = vsyncadd [#allocation11], %s62
      %s64 = sshll.u32 [#allocation10], 4
      %s65 = int_to_ptr.vmem [resolvable:$true] %s64
      %70 = dma.hbm_to_vmem [thread:$0]  %s4, 512, %s65, [#allocation11], 256, 256, 16
    $region21: #{tpu_custom_call.1} parent=1 // pred_fallthru
      _
    // Predicated region
    $region22: #{tpu_custom_call.1} parent=1 // pred_check
      _
    $region23: #{tpu_custom_call.1} parent=1 // pred_check_branch
      %72 = sbr.rel (0) target = $region25
    $region24: #{tpu_custom_call.1} parent=1 // pred_region
      %73 = dma.done [#allocation3], 1024
    $region25: #{tpu_custom_call.1} parent=1 // pred_fallthru
      _
    // Predicated region
    $region26: #{tpu_custom_call.1} parent=1 // pred_check
      _
    $region27: #{tpu_custom_call.1} parent=1 // pred_check_branch
      %75 = sbr.rel (0) target = $region29
    $region28: #{tpu_custom_call.1} parent=1 // pred_region
      %76 = dma.done [#allocation7], 256
    $region29: #{tpu_custom_call.1} parent=1 // pred_fallthru
      _
    // Predicated region
    $region30: #{tpu_custom_call.1} parent=1 // pred_check
      _
    $region31: #{tpu_custom_call.1} parent=1 // pred_check_branch
      %78 = sbr.rel (0) target = $region33
    $region32: #{tpu_custom_call.1} parent=1 // pred_region
      %79 = dma.done [#allocation5], 64
    $region33: #{tpu_custom_call.1} parent=1 // pred_fallthru
      _
    // Predicated region
    $region34: #{tpu_custom_call.1} parent=1 // pred_check
      _
    $region35: #{tpu_custom_call.1} parent=1 // pred_check_branch
      %81 = sbr.rel (0) target = $region37
    $region36: #{tpu_custom_call.1} parent=1 // pred_region
      %82 = dma.done [#allocation7], 1024
    $region37: #{tpu_custom_call.1} parent=1 // pred_fallthru
      _
    // Predicated region
    $region38: #{tpu_custom_call.1} parent=1 // pred_check
      _
    $region39: #{tpu_custom_call.1} parent=1 // pred_check_branch
      %84 = sbr.rel (0) target = $region41
    $region40: #{tpu_custom_call.1} parent=1 // pred_region
      %85 = dma.done [#allocation11], 512
    $region41: #{tpu_custom_call.1} parent=1 // pred_fallthru
      _
    %86 = sfence
    %v87 = vld [vmem:[#allocation2] sm:$0xff]
    %v88 = vld [vmem:[#allocation2 + $0x8] sm:$0xff]
    %v89 = vld [vmem:[#allocation2 + $0x10] sm:$0xff]
    %v90 = vld [vmem:[#allocation2 + $0x18] sm:$0xff]
    %v91 = vld [vmem:[#allocation2 + $0x20] sm:$0xff]
    %v92 = vld [vmem:[#allocation2 + $0x28] sm:$0xff]
    %v93 = vld [vmem:[#allocation2 + $0x30] sm:$0xff]
    %v94 = vld [vmem:[#allocation2 + $0x38] sm:$0xff]
    %v95 = vld [vmem:[#allocation6] sm:$0xff]
    %v96 = vld [vmem:[#allocation6 + $0x8] sm:$0xff]
    %vm97 = vcmask 130048
    %v99 = vsel %vm97, %v95, 0
    %v102 = vsel %vm97, %v96, 0
    %104 = vmatprep.subr.mxu0 0.0
    %105 = vmatpush1.msra.mxu0 0.0
    %106 = vmatprep.subr.mxu0 0.0
    %107 = vmatpush1.msra.mxu0 0.0
    %108 = vmatprep.subr.mxu0 0.0
    %109 = vmatpush1.msra.mxu0 0.0
    %110 = vmatprep.subr.mxu0 0.0
    %111 = vmatpush1.msra.mxu0 0.0
    %112 = vmatprep.subr.mxu0 0.0
    %113 = vmatpush1.msra.mxu0 0.0
    %114 = vmatprep.subr.mxu0 0.0
    %115 = vmatpush1.msra.mxu0 0.0
    %116 = vmatprep.subr.mxu0 0.0
    %117 = vmatpush1.msra.mxu0 0.0
    %118 = vmatprep.subr.mxu0 0.0
    %119 = vmatpush1.msra.mxu0 0.0
    %120 = vmatprep.subr.mxu0 0.0
    %121 = vmatpush1.msra.mxu0 0.0
    %122 = vmatprep.subr.mxu0 0.0
    %123 = vmatpush1.msra.mxu0 0.0
    %124 = vmatprep.subr.mxu0 0.0
    %125 = vmatpush1.msra.mxu0 0.0
    %126 = vmatprep.subr.mxu0 0.0
    %127 = vmatpush1.msra.mxu0 0.0
    %128 = vmatprep.subr.mxu0 0.0
    %129 = vmatpush1.msra.mxu0 0.0
    %130 = vmatprep.subr.mxu0 0.0
    %131 = vmatpush1.msra.mxu0 0.0
    %132 = vmatprep.subr.mxu0 %v90
    %133 = vmatpush1.msra.mxu0 %v89
    %134 = vmatprep.subr.mxu0 %v88
    %135 = vmatpush1.msra.mxu0 %v87
    %136 = vmatprep.subr.mxu0 0.0
    %137 = vmatpush2.msra.mxu0 0.0
    %138 = vmatprep.subr.mxu0 0.0
    %139 = vmatpush2.msra.mxu0 0.0
    %140 = vmatprep.subr.mxu0 0.0
    %141 = vmatpush2.msra.mxu0 0.0
    %142 = vmatprep.subr.mxu0 0.0
    %143 = vmatpush2.msra.mxu0 0.0
    %144 = vmatprep.subr.mxu0 0.0
    %145 = vmatpush2.msra.mxu0 0.0
    %146 = vmatprep.subr.mxu0 0.0
    %147 = vmatpush2.msra.mxu0 0.0
    %148 = vmatprep.subr.mxu0 0.0
    %149 = vmatpush2.msra.mxu0 0.0
    %150 = vmatprep.subr.mxu0 0.0
    %151 = vmatpush2.msra.mxu0 0.0
    %152 = vmatprep.subr.mxu0 0.0
    %153 = vmatpush2.msra.mxu0 0.0
    %154 = vmatprep.subr.mxu0 0.0
    %155 = vmatpush2.msra.mxu0 0.0
    %156 = vmatprep.subr.mxu0 0.0
    %157 = vmatpush2.msra.mxu0 0.0
    %158 = vmatprep.subr.mxu0 0.0
    %159 = vmatpush2.msra.mxu0 0.0
    %160 = vmatprep.subr.mxu0 0.0
    %161 = vmatpush2.msra.mxu0 0.0
    %162 = vmatprep.subr.mxu0 0.0
    %163 = vmatpush2.msra.mxu0 0.0
    %164 = vmatprep.subr.mxu0 0.0
    %165 = vmatpush2.msra.mxu0 0.0
    %166 = vmatprep.subr.mxu0 0.0
    %167 = vmatpush2.msra.mxu0 0.0
    %168 = vmatprep.mubr.f32.mxu0 0.0
    %169 = vmatmul.mubr.f32.gmra.mxu0 %v99
    %v170 = vpop.f32.mrf.mxu0
    %v171 = vadd.f32 0.0, %v170
    %v172 = vpop.f32.mrf.mxu0
    %v173 = vadd.f32 0.0, %v172
    %174 = vmatprep.mubr.f32.mxu0 0.0
    %175 = vmatmul.mubr.f32.gmra.mxu0 %v102
    %v176 = vpop.f32.mrf.mxu0
    %v177 = vadd.f32 0.0, %v176
    %v178 = vpop.f32.mrf.mxu0
    %v179 = vadd.f32 0.0, %v178
    %180 = vdwg.mxu0
    %181 = vmatprep.subr.mxu0 0.0
    %182 = vmatpush1.msra.mxu0 0.0
    %183 = vmatprep.subr.mxu0 0.0
    %184 = vmatpush1.msra.mxu0 0.0
    %185 = vmatprep.subr.mxu0 0.0
    %186 = vmatpush1.msra.mxu0 0.0
    %187 = vmatprep.subr.mxu0 0.0
    %188 = vmatpush1.msra.mxu0 0.0
    %189 = vmatprep.subr.mxu0 0.0
    %190 = vmatpush1.msra.mxu0 0.0
    %191 = vmatprep.subr.mxu0 0.0
    %192 = vmatpush1.msra.mxu0 0.0
    %193 = vmatprep.subr.mxu0 0.0
    %194 = vmatpush1.msra.mxu0 0.0
    %195 = vmatprep.subr.mxu0 0.0
    %196 = vmatpush1.msra.mxu0 0.0
    %197 = vmatprep.subr.mxu0 0.0
    %198 = vmatpush1.msra.mxu0 0.0
    %199 = vmatprep.subr.mxu0 0.0
    %200 = vmatpush1.msra.mxu0 0.0
    %201 = vmatprep.subr.mxu0 0.0
    %202 = vmatpush1.msra.mxu0 0.0
    %203 = vmatprep.subr.mxu0 0.0
    %204 = vmatpush1.msra.mxu0 0.0
    %205 = vmatprep.subr.mxu0 0.0
    %206 = vmatpush1.msra.mxu0 0.0
    %207 = vmatprep.subr.mxu0 0.0
    %208 = vmatpush1.msra.mxu0 0.0
    %209 = vmatprep.subr.mxu0 %v94
    %210 = vmatpush1.msra.mxu0 %v93
    %211 = vmatprep.subr.mxu0 %v92
    %212 = vmatpush1.msra.mxu0 %v91
    %213 = vmatprep.subr.mxu0 0.0
    %214 = vmatpush2.msra.mxu0 0.0
    %215 = vmatprep.subr.mxu0 0.0
    %216 = vmatpush2.msra.mxu0 0.0
    %217 = vmatprep.subr.mxu0 0.0
    %218 = vmatpush2.msra.mxu0 0.0
    %219 = vmatprep.subr.mxu0 0.0
    %220 = vmatpush2.msra.mxu0 0.0
    %221 = vmatprep.subr.mxu0 0.0
    %222 = vmatpush2.msra.mxu0 0.0
    %223 = vmatprep.subr.mxu0 0.0
    %224 = vmatpush2.msra.mxu0 0.0
    %225 = vmatprep.subr.mxu0 0.0
    %226 = vmatpush2.msra.mxu0 0.0
    %227 = vmatprep.subr.mxu0 0.0
    %228 = vmatpush2.msra.mxu0 0.0
    %229 = vmatprep.subr.mxu0 0.0
    %230 = vmatpush2.msra.mxu0 0.0
    %231 = vmatprep.subr.mxu0 0.0
    %232 = vmatpush2.msra.mxu0 0.0
    %233 = vmatprep.subr.mxu0 0.0
    %234 = vmatpush2.msra.mxu0 0.0
    %235 = vmatprep.subr.mxu0 0.0
    %236 = vmatpush2.msra.mxu0 0.0
    %237 = vmatprep.subr.mxu0 0.0
    %238 = vmatpush2.msra.mxu0 0.0
    %239 = vmatprep.subr.mxu0 0.0
    %240 = vmatpush2.msra.mxu0 0.0
    %241 = vmatprep.subr.mxu0 0.0
    %242 = vmatpush2.msra.mxu0 0.0
    %243 = vmatprep.subr.mxu0 0.0
    %244 = vmatpush2.msra.mxu0 0.0
    %245 = vmatprep.mubr.f32.mxu0 0.0
    %246 = vmatmul.mubr.f32.gmra.mxu0 %v99
    %v247 = vpop.f32.mrf.mxu0
    %v248 = vadd.f32 0.0, %v247
    %v249 = vpop.f32.mrf.mxu0
    %v250 = vadd.f32 0.0, %v249
    %251 = vmatprep.mubr.f32.mxu0 0.0
    %252 = vmatmul.mubr.f32.gmra.mxu0 %v102
    %v253 = vpop.f32.mrf.mxu0
    %v254 = vadd.f32 0.0, %v253
    %v255 = vpop.f32.mrf.mxu0
    %v256 = vadd.f32 0.0, %v255
    %257 = vdwg.mxu0
    %v258 = vadd.f32 %v171, %v173
    %259 = vadd.xlane.f32.xlu0 %v258
    %v260 = vpop.xlane.xlu0 %259
    %v261 = vadd.f32 %v177, %v179
    %262 = vadd.xlane.f32.xlu0 %v261
    %v263 = vpop.xlane.xlu0 %262
    %v264 = vadd.f32 %v248, %v250
    %265 = vadd.xlane.f32.xlu0 %v264
    %v266 = vpop.xlane.xlu0 %265
    %v267 = vadd.f32 %v254, %v256
    %268 = vadd.xlane.f32.xlu0 %v267
    %v269 = vpop.xlane.xlu0 %268
    %v270 = vadd.f32 %v260, %v266
    %v271 = vadd.f32 %v263, %v269
    %v272 = vmul.f32 %v270, 0.001953125
    %v273 = vmul.f32 %v271, 0.001953125
    %v274 = vsub.f32 %v171, %v272
    %v275 = vsub.f32 %v173, %v272
    %v276 = vsub.f32 %v177, %v273
    %v277 = vsub.f32 %v179, %v273
    %v278 = vsub.f32 %v248, %v272
    %v279 = vsub.f32 %v250, %v272
    %v280 = vsub.f32 %v254, %v273
    %v281 = vsub.f32 %v256, %v273
    %v282 = vmul.f32 %v274, %v274
    %v283 = vmul.f32 %v275, %v275
    %v284 = vmul.f32 %v276, %v276
    %v285 = vmul.f32 %v277, %v277
    %v286 = vmul.f32 %v278, %v278
    %v287 = vmul.f32 %v279, %v279
    %v288 = vmul.f32 %v280, %v280
    %v289 = vmul.f32 %v281, %v281
    %v290 = vadd.f32 %v282, %v283
    %291 = vadd.xlane.f32.xlu0 %v290
    %v292 = vpop.xlane.xlu0 %291
    %v293 = vadd.f32 %v284, %v285
    %294 = vadd.xlane.f32.xlu0 %v293
    %v295 = vpop.xlane.xlu0 %294
    %v296 = vadd.f32 %v286, %v287
    %297 = vadd.xlane.f32.xlu0 %v296
    %v298 = vpop.xlane.xlu0 %297
    %v299 = vadd.f32 %v288, %v289
    %300 = vadd.xlane.f32.xlu0 %v299
    %v301 = vpop.xlane.xlu0 %300
    %v302 = vadd.f32 %v292, %v298
    %v303 = vadd.f32 %v295, %v301
    %v304 = vmul.f32 %v302, 0.001953125
    %v305 = vmul.f32 %v303, 0.001953125
    %v306 = vadd.f32 %v304, 1e-05
    %v307 = vadd.f32 %v305, 1e-05
    %v308 = vrsqrt.pop %v306
    %v309 = vrsqrt.pop %v307
    %v310 = vmul.f32 %v274, %v308
    %v311 = vmul.f32 %v275, %v308
    %v312 = vmul.f32 %v276, %v309
    %v313 = vmul.f32 %v277, %v309
    %v314 = vmul.f32 %v278, %v308
    %v315 = vmul.f32 %v279, %v308
    %v316 = vmul.f32 %v280, %v309
    %v317 = vmul.f32 %v281, %v309
    %vm318 = vcmp.gt.f32.partialorder %v310, 0.0001
    %vm319 = vcmp.gt.f32.partialorder %v311, 0.0001
    %vm320 = vcmp.gt.f32.partialorder %v312, 0.0001
    %vm321 = vcmp.gt.f32.partialorder %v313, 0.0001
    %vm322 = vcmp.gt.f32.partialorder %v314, 0.0001
    %vm323 = vcmp.gt.f32.partialorder %v315, 0.0001
    %vm324 = vcmp.gt.f32.partialorder %v316, 0.0001
    %vm325 = vcmp.gt.f32.partialorder %v317, 0.0001
    %v326 = vsub.f32 %v310, 0.0001
    %v327 = vsub.f32 %v311, 0.0001
    %v328 = vsub.f32 %v312, 0.0001
    %v329 = vsub.f32 %v313, 0.0001
    %v330 = vsub.f32 %v314, 0.0001
    %v331 = vsub.f32 %v315, 0.0001
    %v332 = vsub.f32 %v316, 0.0001
    %v333 = vsub.f32 %v317, 0.0001
    %vm334 = vcmp.lt.f32.partialorder %v310, -0.0001
    %vm335 = vcmp.lt.f32.partialorder %v311, -0.0001
    %vm336 = vcmp.lt.f32.partialorder %v312, -0.0001
    %vm337 = vcmp.lt.f32.partialorder %v313, -0.0001
    %vm338 = vcmp.lt.f32.partialorder %v314, -0.0001
    %vm339 = vcmp.lt.f32.partialorder %v315, -0.0001
    %vm340 = vcmp.lt.f32.partialorder %v316, -0.0001
    %vm341 = vcmp.lt.f32.partialorder %v317, -0.0001
    %v342 = vadd.f32 %v310, 0.0001
    %v343 = vadd.f32 %v311, 0.0001
    %v344 = vadd.f32 %v312, 0.0001
    %v345 = vadd.f32 %v313, 0.0001
    %v346 = vadd.f32 %v314, 0.0001
    %v347 = vadd.f32 %v315, 0.0001
    %v348 = vadd.f32 %v316, 0.0001
    %v349 = vadd.f32 %v317, 0.0001
    %v350 = vsel %vm334, %v342, 0.0
    %v351 = vsel %vm335, %v343, 0.0
    %v352 = vsel %vm336, %v344, 0.0
    %v353 = vsel %vm337, %v345, 0.0
    %v354 = vsel %vm338, %v346, 0.0
    %v355 = vsel %vm339, %v347, 0.0
    %v356 = vsel %vm340, %v348, 0.0
    %v357 = vsel %vm341, %v349, 0.0
    %v358 = vsel %vm318, %v326, %v350
    %v359 = vsel %vm319, %v327, %v351
    %v360 = vsel %vm320, %v328, %v352
    %v361 = vsel %vm321, %v329, %v353
    %v362 = vsel %vm322, %v330, %v354
    %v363 = vsel %vm323, %v331, %v355
    %v364 = vsel %vm324, %v332, %v356
    %v365 = vsel %vm325, %v333, %v357
    %366 = vrot.lane.b32.xlu0 %v358, 17
    %v367 = vpop.permute.xlu0 %366
    %368 = vrot.lane.b32.xlu0 %v360, 17
    %v369 = vpop.permute.xlu0 %368
    %370 = vrot.lane.b32.xlu0 %v362, 17
    %v371 = vpop.permute.xlu0 %370
    %372 = vrot.lane.b32.xlu0 %v364, 17
    %v373 = vpop.permute.xlu0 %372
    %374 = vrot.lane.b32.xlu0 %v359, 17
    %v375 = vpop.permute.xlu0 %374
    %376 = vrot.lane.b32.xlu0 %v361, 17
    %v377 = vpop.permute.xlu0 %376
    %378 = vrot.lane.b32.xlu0 %v363, 17
    %v379 = vpop.permute.xlu0 %378
    %380 = vrot.lane.b32.xlu0 %v365, 17
    %v381 = vpop.permute.xlu0 %380
    %v382 = vlaneseq
    %v383 = vand.u32 %v382, 127
    %vm384 = vcmp.lt.s32.totalorder %v383, 17
    %v385 = vsel %vm384, %v367, %v375
    %v386 = vsel %vm384, %v369, %v377
    %v387 = vsel %vm384, %v371, %v379
    %v388 = vsel %vm384, %v373, %v381
    %v389 = vsel %vm384, %v375, %v367
    %v390 = vsel %vm384, %v377, %v369
    %v391 = vsel %vm384, %v379, %v371
    %v392 = vsel %vm384, %v381, %v373
    %v393 = vld [vmem:[#allocation10] ss:$8 sm:$0x3]
    %v395 = vlaneseq
    %v396 = vshrl.u32 %v395, 7
    %v397 = vsub.s32 0, %v396
    %v398 = vrot.slane %v393, %v397
    %v399 = vlaneseq
    %v400 = vshrl.u32 %v399, 7
    %v401 = vsub.s32 1, %v400
    %v402 = vrot.slane %v393, %v401
    %v405 = vmul.f32 %v389, %v398
    %v406 = vmul.f32 %v385, %v402
    %v407 = vmul.f32 %v390, %v398
    %v408 = vmul.f32 %v386, %v402
    %v409 = vmul.f32 %v391, %v398
    %v410 = vmul.f32 %v387, %v402
    %v411 = vmul.f32 %v392, %v398
    %v412 = vmul.f32 %v388, %v402
    %s413 = sld [smem:[#allocation8]]
    %v414 = vstv %s413
    %v415 = vmul.f32 %v414, %v405
    %v416 = vmul.f32 %v414, %v406
    %v417 = vmul.f32 %v414, %v407
    %v418 = vmul.f32 %v414, %v408
    %v419 = vmul.f32 %v414, %v409
    %v420 = vmul.f32 %v414, %v410
    %v421 = vmul.f32 %v414, %v411
    %v422 = vmul.f32 %v414, %v412
    %v423 = vadd.f32 %v415, 0.0
    %v424 = vadd.f32 %v416, 0.0
    %v425 = vadd.f32 %v417, 0.0
    %v426 = vadd.f32 %v418, 0.0
    %v427 = vadd.f32 %v419, 0.0
    %v428 = vadd.f32 %v420, 0.0
    %v429 = vadd.f32 %v421, 0.0
    %v430 = vadd.f32 %v422, 0.0
    %s431 = sld [smem:[#allocation8 + $0x80]]
    %v432 = vstv %s431
    %v433 = vmul.f32 %v432, %v405
    %v434 = vmul.f32 %v432, %v406
    %v435 = vmul.f32 %v432, %v407
    %v436 = vmul.f32 %v432, %v408
    %v437 = vmul.f32 %v432, %v409
    %v438 = vmul.f32 %v432, %v410
    %v439 = vmul.f32 %v432, %v411
    %v440 = vmul.f32 %v432, %v412
    %v441 = vadd.f32 %v433, 0.0
    %v442 = vadd.f32 %v434, 0.0
    %v443 = vadd.f32 %v435, 0.0
    %v444 = vadd.f32 %v436, 0.0
    %v445 = vadd.f32 %v437, 0.0
    %v446 = vadd.f32 %v438, 0.0
    %v447 = vadd.f32 %v439, 0.0
    %v448 = vadd.f32 %v440, 0.0
    %s449 = sld [smem:[#allocation8 + $0x100]]
    %v450 = vstv %s449
    %v451 = vmul.f32 %v450, %v405
    %v452 = vmul.f32 %v450, %v406
    %v453 = vmul.f32 %v450, %v407
    %v454 = vmul.f32 %v450, %v408
    %v455 = vmul.f32 %v450, %v409
    %v456 = vmul.f32 %v450, %v410
    %v457 = vmul.f32 %v450, %v411
    %v458 = vmul.f32 %v450, %v412
    %v459 = vadd.f32 %v451, 0.0
    %v460 = vadd.f32 %v452, 0.0
    %v461 = vadd.f32 %v453, 0.0
    %v462 = vadd.f32 %v454, 0.0
    %v463 = vadd.f32 %v455, 0.0
    %v464 = vadd.f32 %v456, 0.0
    %v465 = vadd.f32 %v457, 0.0
    %v466 = vadd.f32 %v458, 0.0
    %s467 = sld [smem:[#allocation8 + $0x180]]
    %v468 = vstv %s467
    %v469 = vmul.f32 %v468, %v405
    %v470 = vmul.f32 %v468, %v406
    %v471 = vmul.f32 %v468, %v407
    %v472 = vmul.f32 %v468, %v408
    %v473 = vmul.f32 %v468, %v409
    %v474 = vmul.f32 %v468, %v410
    %v475 = vmul.f32 %v468, %v411
    %v476 = vmul.f32 %v468, %v412
    %v477 = vadd.f32 %v469, 0.0
    %v478 = vadd.f32 %v470, 0.0
    %v479 = vadd.f32 %v471, 0.0
    %v480 = vadd.f32 %v472, 0.0
    %v481 = vadd.f32 %v473, 0.0
    %v482 = vadd.f32 %v474, 0.0
    %v483 = vadd.f32 %v475, 0.0
    %v484 = vadd.f32 %v476, 0.0
    %485 = vrot.lane.b32.xlu0 %v358, 16
    %v486 = vpop.permute.xlu0 %485
    %487 = vrot.lane.b32.xlu0 %v360, 16
    %v488 = vpop.permute.xlu0 %487
    %489 = vrot.lane.b32.xlu0 %v362, 16
    %v490 = vpop.permute.xlu0 %489
    %491 = vrot.lane.b32.xlu0 %v364, 16
    %v492 = vpop.permute.xlu0 %491
    %493 = vrot.lane.b32.xlu0 %v359, 16
    %v494 = vpop.permute.xlu0 %493
    %495 = vrot.lane.b32.xlu0 %v361, 16
    %v496 = vpop.permute.xlu0 %495
    %497 = vrot.lane.b32.xlu0 %v363, 16
    %v498 = vpop.permute.xlu0 %497
    %499 = vrot.lane.b32.xlu0 %v365, 16
    %v500 = vpop.permute.xlu0 %499
    %vm501 = vcmp.lt.s32.totalorder %v383, 16
    %v502 = vsel %vm501, %v486, %v494
    %v503 = vsel %vm501, %v488, %v496
    %v504 = vsel %vm501, %v490, %v498
    %v505 = vsel %vm501, %v492, %v500
    %v506 = vsel %vm501, %v494, %v486
    %v507 = vsel %vm501, %v496, %v488
    %v508 = vsel %vm501, %v498, %v490
    %v509 = vsel %vm501, %v500, %v492
    %s510 = scalar_lea.vmem [#allocation10], 1
    %v511 = vld [vmem:[%s510] ss:$8 sm:$0x3]
    %v513 = vlaneseq
    %v514 = vshrl.u32 %v513, 7
    %v515 = vsub.s32 0, %v514
    %v516 = vrot.slane %v511, %v515
    %v517 = vlaneseq
    %v518 = vshrl.u32 %v517, 7
    %v519 = vsub.s32 1, %v518
    %v520 = vrot.slane %v511, %v519
    %v523 = vmul.f32 %v506, %v516
    %v524 = vmul.f32 %v502, %v520
    %v525 = vmul.f32 %v507, %v516
    %v526 = vmul.f32 %v503, %v520
    %v527 = vmul.f32 %v508, %v516
    %v528 = vmul.f32 %v504, %v520
    %v529 = vmul.f32 %v509, %v516
    %v530 = vmul.f32 %v505, %v520
    %s531 = sld [smem:[#allocation8 + $0x1]]
    %v532 = vstv %s531
    %v533 = vmul.f32 %v532, %v523
    %v534 = vmul.f32 %v532, %v524
    %v535 = vmul.f32 %v532, %v525
    %v536 = vmul.f32 %v532, %v526
    %v537 = vmul.f32 %v532, %v527
    %v538 = vmul.f32 %v532, %v528
    %v539 = vmul.f32 %v532, %v529
    %v540 = vmul.f32 %v532, %v530
    %v541 = vadd.f32 %v423, %v533
    %v542 = vadd.f32 %v424, %v534
    %v543 = vadd.f32 %v425, %v535
    %v544 = vadd.f32 %v426, %v536
    %v545 = vadd.f32 %v427, %v537
    %v546 = vadd.f32 %v428, %v538
    %v547 = vadd.f32 %v429, %v539
    %v548 = vadd.f32 %v430, %v540
    %s549 = sld [smem:[#allocation8 + $0x81]]
    %v550 = vstv %s549
    %v551 = vmul.f32 %v550, %v523
    %v552 = vmul.f32 %v550, %v524
    %v553 = vmul.f32 %v550, %v525
    %v554 = vmul.f32 %v550, %v526
    %v555 = vmul.f32 %v550, %v527
    %v556 = vmul.f32 %v550, %v528
    %v557 = vmul.f32 %v550, %v529
    %v558 = vmul.f32 %v550, %v530
    %v559 = vadd.f32 %v441, %v551
    %v560 = vadd.f32 %v442, %v552
    %v561 = vadd.f32 %v443, %v553
    %v562 = vadd.f32 %v444, %v554
    %v563 = vadd.f32 %v445, %v555
    %v564 = vadd.f32 %v446, %v556
    %v565 = vadd.f32 %v447, %v557
    %v566 = vadd.f32 %v448, %v558
    %s567 = sld [smem:[#allocation8 + $0x101]]
    %v568 = vstv %s567
    %v569 = vmul.f32 %v568, %v523
    %v570 = vmul.f32 %v568, %v524
    %v571 = vmul.f32 %v568, %v525
    %v572 = vmul.f32 %v568, %v526
    %v573 = vmul.f32 %v568, %v527
    %v574 = vmul.f32 %v568, %v528
    %v575 = vmul.f32 %v568, %v529
    %v576 = vmul.f32 %v568, %v530
    %v577 = vadd.f32 %v459, %v569
    %v578 = vadd.f32 %v460, %v570
    %v579 = vadd.f32 %v461, %v571
    %v580 = vadd.f32 %v462, %v572
    %v581 = vadd.f32 %v463, %v573
    %v582 = vadd.f32 %v464, %v574
    %v583 = vadd.f32 %v465, %v575
    %v584 = vadd.f32 %v466, %v576
    %s585 = sld [smem:[#allocation8 + $0x181]]
    %v586 = vstv %s585
    %v587 = vmul.f32 %v586, %v523
    %v588 = vmul.f32 %v586, %v524
    %v589 = vmul.f32 %v586, %v525
    %v590 = vmul.f32 %v586, %v526
    %v591 = vmul.f32 %v586, %v527
    %v592 = vmul.f32 %v586, %v528
    %v593 = vmul.f32 %v586, %v529
    %v594 = vmul.f32 %v586, %v530
    %v595 = vadd.f32 %v477, %v587
    %v596 = vadd.f32 %v478, %v588
    %v597 = vadd.f32 %v479, %v589
    %v598 = vadd.f32 %v480, %v590
    %v599 = vadd.f32 %v481, %v591
    %v600 = vadd.f32 %v482, %v592
    %v601 = vadd.f32 %v483, %v593
    %v602 = vadd.f32 %v484, %v594
    %603 = vrot.lane.b32.xlu0 %v358, 15
    %v604 = vpop.permute.xlu0 %603
    %605 = vrot.lane.b32.xlu0 %v360, 15
    %v606 = vpop.permute.xlu0 %605
    %607 = vrot.lane.b32.xlu0 %v362, 15
    %v608 = vpop.permute.xlu0 %607
    %609 = vrot.lane.b32.xlu0 %v364, 15
    %v610 = vpop.permute.xlu0 %609
    %611 = vrot.lane.b32.xlu0 %v359, 15
    %v612 = vpop.permute.xlu0 %611
    %613 = vrot.lane.b32.xlu0 %v361, 15
    %v614 = vpop.permute.xlu0 %613
    %615 = vrot.lane.b32.xlu0 %v363, 15
    %v616 = vpop.permute.xlu0 %615
    %617 = vrot.lane.b32.xlu0 %v365, 15
    %v618 = vpop.permute.xlu0 %617
    %vm619 = vcmp.lt.s32.totalorder %v383, 15
    %v620 = vsel %vm619, %v604, %v612
    %v621 = vsel %vm619, %v606, %v614
    %v622 = vsel %vm619, %v608, %v616
    %v623 = vsel %vm619, %v610, %v618
    %v624 = vsel %vm619, %v612, %v604
    %v625 = vsel %vm619, %v614, %v606
    %v626 = vsel %vm619, %v616, %v608
    %v627 = vsel %vm619, %v618, %v610
    %s628 = scalar_lea.vmem [#allocation10], 2
    %v629 = vld [vmem:[%s628] ss:$8 sm:$0x3]
    %v631 = vlaneseq
    %v632 = vshrl.u32 %v631, 7
    %v633 = vsub.s32 0, %v632
    %v634 = vrot.slane %v629, %v633
    %v635 = vlaneseq
    %v636 = vshrl.u32 %v635, 7
    %v637 = vsub.s32 1, %v636
    %v638 = vrot.slane %v629, %v637
    %v641 = vmul.f32 %v624, %v634
    %v642 = vmul.f32 %v620, %v638
    %v643 = vmul.f32 %v625, %v634
    %v644 = vmul.f32 %v621, %v638
    %v645 = vmul.f32 %v626, %v634
    %v646 = vmul.f32 %v622, %v638
    %v647 = vmul.f32 %v627, %v634
    %v648 = vmul.f32 %v623, %v638
    %s649 = sld [smem:[#allocation8 + $0x2]]
    %v650 = vstv %s649
    %v651 = vmul.f32 %v650, %v641
    %v652 = vmul.f32 %v650, %v642
    %v653 = vmul.f32 %v650, %v643
    %v654 = vmul.f32 %v650, %v644
    %v655 = vmul.f32 %v650, %v645
    %v656 = vmul.f32 %v650, %v646
    %v657 = vmul.f32 %v650, %v647
    %v658 = vmul.f32 %v650, %v648
    %v659 = vadd.f32 %v541, %v651
    %v660 = vadd.f32 %v542, %v652
    %v661 = vadd.f32 %v543, %v653
    %v662 = vadd.f32 %v544, %v654
    %v663 = vadd.f32 %v545, %v655
    %v664 = vadd.f32 %v546, %v656
    %v665 = vadd.f32 %v547, %v657
    %v666 = vadd.f32 %v548, %v658
    %s667 = sld [smem:[#allocation8 + $0x82]]
    %v668 = vstv %s667
    %v669 = vmul.f32 %v668, %v641
    %v670 = vmul.f32 %v668, %v642
    %v671 = vmul.f32 %v668, %v643
    %v672 = vmul.f32 %v668, %v644
    %v673 = vmul.f32 %v668, %v645
    %v674 = vmul.f32 %v668, %v646
    %v675 = vmul.f32 %v668, %v647
    %v676 = vmul.f32 %v668, %v648
    %v677 = vadd.f32 %v559, %v669
    %v678 = vadd.f32 %v560, %v670
    %v679 = vadd.f32 %v561, %v671
    %v680 = vadd.f32 %v562, %v672
    %v681 = vadd.f32 %v563, %v673
    %v682 = vadd.f32 %v564, %v674
    %v683 = vadd.f32 %v565, %v675
    %v684 = vadd.f32 %v566, %v676
    %s685 = sld [smem:[#allocation8 + $0x102]]
    %v686 = vstv %s685
    %v687 = vmul.f32 %v686, %v641
    %v688 = vmul.f32 %v686, %v642
    %v689 = vmul.f32 %v686, %v643
    %v690 = vmul.f32 %v686, %v644
    %v691 = vmul.f32 %v686, %v645
    %v692 = vmul.f32 %v686, %v646
    %v693 = vmul.f32 %v686, %v647
    %v694 = vmul.f32 %v686, %v648
    %v695 = vadd.f32 %v577, %v687
    %v696 = vadd.f32 %v578, %v688
    %v697 = vadd.f32 %v579, %v689
    %v698 = vadd.f32 %v580, %v690
    %v699 = vadd.f32 %v581, %v691
    %v700 = vadd.f32 %v582, %v692
    %v701 = vadd.f32 %v583, %v693
    %v702 = vadd.f32 %v584, %v694
    %s703 = sld [smem:[#allocation8 + $0x182]]
    %v704 = vstv %s703
    %v705 = vmul.f32 %v704, %v641
    %v706 = vmul.f32 %v704, %v642
    %v707 = vmul.f32 %v704, %v643
    %v708 = vmul.f32 %v704, %v644
    %v709 = vmul.f32 %v704, %v645
    %v710 = vmul.f32 %v704, %v646
    %v711 = vmul.f32 %v704, %v647
    %v712 = vmul.f32 %v704, %v648
    %v713 = vadd.f32 %v595, %v705
    %v714 = vadd.f32 %v596, %v706
    %v715 = vadd.f32 %v597, %v707
    %v716 = vadd.f32 %v598, %v708
    %v717 = vadd.f32 %v599, %v709
    %v718 = vadd.f32 %v600, %v710
    %v719 = vadd.f32 %v601, %v711
    %v720 = vadd.f32 %v602, %v712
    %721 = vrot.lane.b32.xlu0 %v358, 1
    %v722 = vpop.permute.xlu0 %721
    %723 = vrot.lane.b32.xlu0 %v360, 1
    %v724 = vpop.permute.xlu0 %723
    %725 = vrot.lane.b32.xlu0 %v362, 1
    %v726 = vpop.permute.xlu0 %725
    %727 = vrot.lane.b32.xlu0 %v364, 1
    %v728 = vpop.permute.xlu0 %727
    %729 = vrot.lane.b32.xlu0 %v359, 1
    %v730 = vpop.permute.xlu0 %729
    %731 = vrot.lane.b32.xlu0 %v361, 1
    %v732 = vpop.permute.xlu0 %731
    %733 = vrot.lane.b32.xlu0 %v363, 1
    %v734 = vpop.permute.xlu0 %733
    %735 = vrot.lane.b32.xlu0 %v365, 1
    %v736 = vpop.permute.xlu0 %735
    %vm737 = vcmp.lt.s32.totalorder %v383, 1
    %v738 = vsel %vm737, %v722, %v730
    %v739 = vsel %vm737, %v724, %v732
    %v740 = vsel %vm737, %v726, %v734
    %v741 = vsel %vm737, %v728, %v736
    %v742 = vsel %vm737, %v730, %v722
    %v743 = vsel %vm737, %v732, %v724
    %v744 = vsel %vm737, %v734, %v726
    %v745 = vsel %vm737, %v736, %v728
    %s746 = scalar_lea.vmem [#allocation10], 3
    %v747 = vld [vmem:[%s746] ss:$8 sm:$0x3]
    %v749 = vlaneseq
    %v750 = vshrl.u32 %v749, 7
    %v751 = vsub.s32 0, %v750
    %v752 = vrot.slane %v747, %v751
    %v753 = vlaneseq
    %v754 = vshrl.u32 %v753, 7
    %v755 = vsub.s32 1, %v754
    %v756 = vrot.slane %v747, %v755
    %v759 = vmul.f32 %v742, %v752
    %v760 = vmul.f32 %v738, %v756
    %v761 = vmul.f32 %v743, %v752
    %v762 = vmul.f32 %v739, %v756
    %v763 = vmul.f32 %v744, %v752
    %v764 = vmul.f32 %v740, %v756
    %v765 = vmul.f32 %v745, %v752
    %v766 = vmul.f32 %v741, %v756
    %s767 = sld [smem:[#allocation8 + $0x3]]
    %v768 = vstv %s767
    %v769 = vmul.f32 %v768, %v759
    %v770 = vmul.f32 %v768, %v760
    %v771 = vmul.f32 %v768, %v761
    %v772 = vmul.f32 %v768, %v762
    %v773 = vmul.f32 %v768, %v763
    %v774 = vmul.f32 %v768, %v764
    %v775 = vmul.f32 %v768, %v765
    %v776 = vmul.f32 %v768, %v766
    %v777 = vadd.f32 %v659, %v769
    %v778 = vadd.f32 %v660, %v770
    %v779 = vadd.f32 %v661, %v771
    %v780 = vadd.f32 %v662, %v772
    %v781 = vadd.f32 %v663, %v773
    %v782 = vadd.f32 %v664, %v774
    %v783 = vadd.f32 %v665, %v775
    %v784 = vadd.f32 %v666, %v776
    %s785 = sld [smem:[#allocation8 + $0x83]]
    %v786 = vstv %s785
    %v787 = vmul.f32 %v786, %v759
    %v788 = vmul.f32 %v786, %v760
    %v789 = vmul.f32 %v786, %v761
    %v790 = vmul.f32 %v786, %v762
    %v791 = vmul.f32 %v786, %v763
    %v792 = vmul.f32 %v786, %v764
    %v793 = vmul.f32 %v786, %v765
    %v794 = vmul.f32 %v786, %v766
    %v795 = vadd.f32 %v677, %v787
    %v796 = vadd.f32 %v678, %v788
    %v797 = vadd.f32 %v679, %v789
    %v798 = vadd.f32 %v680, %v790
    %v799 = vadd.f32 %v681, %v791
    %v800 = vadd.f32 %v682, %v792
    %v801 = vadd.f32 %v683, %v793
    %v802 = vadd.f32 %v684, %v794
    %s803 = sld [smem:[#allocation8 + $0x103]]
    %v804 = vstv %s803
    %v805 = vmul.f32 %v804, %v759
    %v806 = vmul.f32 %v804, %v760
    %v807 = vmul.f32 %v804, %v761
    %v808 = vmul.f32 %v804, %v762
    %v809 = vmul.f32 %v804, %v763
    %v810 = vmul.f32 %v804, %v764
    %v811 = vmul.f32 %v804, %v765
    %v812 = vmul.f32 %v804, %v766
    %v813 = vadd.f32 %v695, %v805
    %v814 = vadd.f32 %v696, %v806
    %v815 = vadd.f32 %v697, %v807
    %v816 = vadd.f32 %v698, %v808
    %v817 = vadd.f32 %v699, %v809
    %v818 = vadd.f32 %v700, %v810
    %v819 = vadd.f32 %v701, %v811
    %v820 = vadd.f32 %v702, %v812
    %s821 = sld [smem:[#allocation8 + $0x183]]
    %v822 = vstv %s821
    %v823 = vmul.f32 %v822, %v759
    %v824 = vmul.f32 %v822, %v760
    %v825 = vmul.f32 %v822, %v761
    %v826 = vmul.f32 %v822, %v762
    %v827 = vmul.f32 %v822, %v763
    %v828 = vmul.f32 %v822, %v764
    %v829 = vmul.f32 %v822, %v765
    %v830 = vmul.f32 %v822, %v766
    %v831 = vadd.f32 %v713, %v823
    %v832 = vadd.f32 %v714, %v824
    %v833 = vadd.f32 %v715, %v825
    %v834 = vadd.f32 %v716, %v826
    %v835 = vadd.f32 %v717, %v827
    %v836 = vadd.f32 %v718, %v828
    %v837 = vadd.f32 %v719, %v829
    %v838 = vadd.f32 %v720, %v830
    %s839 = scalar_lea.vmem [#allocation10], 4
    %v840 = vld [vmem:[%s839] ss:$8 sm:$0x3]
    %v842 = vlaneseq
    %v843 = vshrl.u32 %v842, 7
    %v844 = vsub.s32 0, %v843
    %v845 = vrot.slane %v840, %v844
    %v846 = vlaneseq
    %v847 = vshrl.u32 %v846, 7
    %v848 = vsub.s32 1, %v847
    %v849 = vrot.slane %v840, %v848
    %v852 = vmul.f32 %v358, %v845
    %v853 = vmul.f32 %v359, %v849
    %v854 = vmul.f32 %v360, %v845
    %v855 = vmul.f32 %v361, %v849
    %v856 = vmul.f32 %v362, %v845
    %v857 = vmul.f32 %v363, %v849
    %v858 = vmul.f32 %v364, %v845
    %v859 = vmul.f32 %v365, %v849
    %s860 = sld [smem:[#allocation8 + $0x4]]
    %v861 = vstv %s860
    %v862 = vmul.f32 %v861, %v852
    %v863 = vmul.f32 %v861, %v853
    %v864 = vmul.f32 %v861, %v854
    %v865 = vmul.f32 %v861, %v855
    %v866 = vmul.f32 %v861, %v856
    %v867 = vmul.f32 %v861, %v857
    %v868 = vmul.f32 %v861, %v858
    %v869 = vmul.f32 %v861, %v859
    %v870 = vadd.f32 %v777, %v862
    %v871 = vadd.f32 %v778, %v863
    %v872 = vadd.f32 %v779, %v864
    %v873 = vadd.f32 %v780, %v865
    %v874 = vadd.f32 %v781, %v866
    %v875 = vadd.f32 %v782, %v867
    %v876 = vadd.f32 %v783, %v868
    %v877 = vadd.f32 %v784, %v869
    %s878 = sld [smem:[#allocation8 + $0x84]]
    %v879 = vstv %s878
    %v880 = vmul.f32 %v879, %v852
    %v881 = vmul.f32 %v879, %v853
    %v882 = vmul.f32 %v879, %v854
    %v883 = vmul.f32 %v879, %v855
    %v884 = vmul.f32 %v879, %v856
    %v885 = vmul.f32 %v879, %v857
    %v886 = vmul.f32 %v879, %v858
    %v887 = vmul.f32 %v879, %v859
    %v888 = vadd.f32 %v795, %v880
    %v889 = vadd.f32 %v796, %v881
    %v890 = vadd.f32 %v797, %v882
    %v891 = vadd.f32 %v798, %v883
    %v892 = vadd.f32 %v799, %v884
    %v893 = vadd.f32 %v800, %v885
    %v894 = vadd.f32 %v801, %v886
    %v895 = vadd.f32 %v802, %v887
    %s896 = sld [smem:[#allocation8 + $0x104]]
    %v897 = vstv %s896
    %v898 = vmul.f32 %v897, %v852
    %v899 = vmul.f32 %v897, %v853
    %v900 = vmul.f32 %v897, %v854
    %v901 = vmul.f32 %v897, %v855
    %v902 = vmul.f32 %v897, %v856
    %v903 = vmul.f32 %v897, %v857
    %v904 = vmul.f32 %v897, %v858
    %v905 = vmul.f32 %v897, %v859
    %v906 = vadd.f32 %v813, %v898
    %v907 = vadd.f32 %v814, %v899
    %v908 = vadd.f32 %v815, %v900
    %v909 = vadd.f32 %v816, %v901
    %v910 = vadd.f32 %v817, %v902
    %v911 = vadd.f32 %v818, %v903
    %v912 = vadd.f32 %v819, %v904
    %v913 = vadd.f32 %v820, %v905
    %s914 = sld [smem:[#allocation8 + $0x184]]
    %v915 = vstv %s914
    %v916 = vmul.f32 %v915, %v852
    %v917 = vmul.f32 %v915, %v853
    %v918 = vmul.f32 %v915, %v854
    %v919 = vmul.f32 %v915, %v855
    %v920 = vmul.f32 %v915, %v856
    %v921 = vmul.f32 %v915, %v857
    %v922 = vmul.f32 %v915, %v858
    %v923 = vmul.f32 %v915, %v859
    %v924 = vadd.f32 %v831, %v916
    %v925 = vadd.f32 %v832, %v917
    %v926 = vadd.f32 %v833, %v918
    %v927 = vadd.f32 %v834, %v919
    %v928 = vadd.f32 %v835, %v920
    %v929 = vadd.f32 %v836, %v921
    %v930 = vadd.f32 %v837, %v922
    %v931 = vadd.f32 %v838, %v923
    %932 = vrot.lane.b32.xlu0 %v358, 127
    %v933 = vpop.permute.xlu0 %932
    %934 = vrot.lane.b32.xlu0 %v360, 127
    %v935 = vpop.permute.xlu0 %934
    %936 = vrot.lane.b32.xlu0 %v362, 127
    %v937 = vpop.permute.xlu0 %936
    %938 = vrot.lane.b32.xlu0 %v364, 127
    %v939 = vpop.permute.xlu0 %938
    %940 = vrot.lane.b32.xlu0 %v359, 127
    %v941 = vpop.permute.xlu0 %940
    %942 = vrot.lane.b32.xlu0 %v361, 127
    %v943 = vpop.permute.xlu0 %942
    %944 = vrot.lane.b32.xlu0 %v363, 127
    %v945 = vpop.permute.xlu0 %944
    %946 = vrot.lane.b32.xlu0 %v365, 127
    %v947 = vpop.permute.xlu0 %946
    %vm948 = vcmp.lt.s32.totalorder %v383, 127
    %v949 = vsel %vm948, %v933, %v941
    %v950 = vsel %vm948, %v935, %v943
    %v951 = vsel %vm948, %v937, %v945
    %v952 = vsel %vm948, %v939, %v947
    %v953 = vsel %vm948, %v941, %v933
    %v954 = vsel %vm948, %v943, %v935
    %v955 = vsel %vm948, %v945, %v937
    %v956 = vsel %vm948, %v947, %v939
    %s957 = scalar_lea.vmem [#allocation10], 5
    %v958 = vld [vmem:[%s957] ss:$8 sm:$0x3]
    %v960 = vlaneseq
    %v961 = vshrl.u32 %v960, 7
    %v962 = vsub.s32 0, %v961
    %v963 = vrot.slane %v958, %v962
    %v964 = vlaneseq
    %v965 = vshrl.u32 %v964, 7
    %v966 = vsub.s32 1, %v965
    %v967 = vrot.slane %v958, %v966
    %v970 = vmul.f32 %v949, %v963
    %v971 = vmul.f32 %v953, %v967
    %v972 = vmul.f32 %v950, %v963
    %v973 = vmul.f32 %v954, %v967
    %v974 = vmul.f32 %v951, %v963
    %v975 = vmul.f32 %v955, %v967
    %v976 = vmul.f32 %v952, %v963
    %v977 = vmul.f32 %v956, %v967
    %s978 = sld [smem:[#allocation8 + $0x5]]
    %v979 = vstv %s978
    %v980 = vmul.f32 %v979, %v970
    %v981 = vmul.f32 %v979, %v971
    %v982 = vmul.f32 %v979, %v972
    %v983 = vmul.f32 %v979, %v973
    %v984 = vmul.f32 %v979, %v974
    %v985 = vmul.f32 %v979, %v975
    %v986 = vmul.f32 %v979, %v976
    %v987 = vmul.f32 %v979, %v977
    %v988 = vadd.f32 %v870, %v980
    %v989 = vadd.f32 %v871, %v981
    %v990 = vadd.f32 %v872, %v982
    %v991 = vadd.f32 %v873, %v983
    %v992 = vadd.f32 %v874, %v984
    %v993 = vadd.f32 %v875, %v985
    %v994 = vadd.f32 %v876, %v986
    %v995 = vadd.f32 %v877, %v987
    %s996 = sld [smem:[#allocation8 + $0x85]]
    %v997 = vstv %s996
    %v998 = vmul.f32 %v997, %v970
    %v999 = vmul.f32 %v997, %v971
    %v1000 = vmul.f32 %v997, %v972
    %v1001 = vmul.f32 %v997, %v973
    %v1002 = vmul.f32 %v997, %v974
    %v1003 = vmul.f32 %v997, %v975
    %v1004 = vmul.f32 %v997, %v976
    %v1005 = vmul.f32 %v997, %v977
    %v1006 = vadd.f32 %v888, %v998
    %v1007 = vadd.f32 %v889, %v999
    %v1008 = vadd.f32 %v890, %v1000
    %v1009 = vadd.f32 %v891, %v1001
    %v1010 = vadd.f32 %v892, %v1002
    %v1011 = vadd.f32 %v893, %v1003
    %v1012 = vadd.f32 %v894, %v1004
    %v1013 = vadd.f32 %v895, %v1005
    %s1014 = sld [smem:[#allocation8 + $0x105]]
    %v1015 = vstv %s1014
    %v1016 = vmul.f32 %v1015, %v970
    %v1017 = vmul.f32 %v1015, %v971
    %v1018 = vmul.f32 %v1015, %v972
    %v1019 = vmul.f32 %v1015, %v973
    %v1020 = vmul.f32 %v1015, %v974
    %v1021 = vmul.f32 %v1015, %v975
    %v1022 = vmul.f32 %v1015, %v976
    %v1023 = vmul.f32 %v1015, %v977
    %v1024 = vadd.f32 %v906, %v1016
    %v1025 = vadd.f32 %v907, %v1017
    %v1026 = vadd.f32 %v908, %v1018
    %v1027 = vadd.f32 %v909, %v1019
    %v1028 = vadd.f32 %v910, %v1020
    %v1029 = vadd.f32 %v911, %v1021
    %v1030 = vadd.f32 %v912, %v1022
    %v1031 = vadd.f32 %v913, %v1023
    %s1032 = sld [smem:[#allocation8 + $0x185]]
    %v1033 = vstv %s1032
    %v1034 = vmul.f32 %v1033, %v970
    %v1035 = vmul.f32 %v1033, %v971
    %v1036 = vmul.f32 %v1033, %v972
    %v1037 = vmul.f32 %v1033, %v973
    %v1038 = vmul.f32 %v1033, %v974
    %v1039 = vmul.f32 %v1033, %v975
    %v1040 = vmul.f32 %v1033, %v976
    %v1041 = vmul.f32 %v1033, %v977
    %v1042 = vadd.f32 %v924, %v1034
    %v1043 = vadd.f32 %v925, %v1035
    %v1044 = vadd.f32 %v926, %v1036
    %v1045 = vadd.f32 %v927, %v1037
    %v1046 = vadd.f32 %v928, %v1038
    %v1047 = vadd.f32 %v929, %v1039
    %v1048 = vadd.f32 %v930, %v1040
    %v1049 = vadd.f32 %v931, %v1041
    %1050 = vrot.lane.b32.xlu0 %v358, 113
    %v1051 = vpop.permute.xlu0 %1050
    %1052 = vrot.lane.b32.xlu0 %v360, 113
    %v1053 = vpop.permute.xlu0 %1052
    %1054 = vrot.lane.b32.xlu0 %v362, 113
    %v1055 = vpop.permute.xlu0 %1054
    %1056 = vrot.lane.b32.xlu0 %v364, 113
    %v1057 = vpop.permute.xlu0 %1056
    %1058 = vrot.lane.b32.xlu0 %v359, 113
    %v1059 = vpop.permute.xlu0 %1058
    %1060 = vrot.lane.b32.xlu0 %v361, 113
    %v1061 = vpop.permute.xlu0 %1060
    %1062 = vrot.lane.b32.xlu0 %v363, 113
    %v1063 = vpop.permute.xlu0 %1062
    %1064 = vrot.lane.b32.xlu0 %v365, 113
    %v1065 = vpop.permute.xlu0 %1064
    %vm1066 = vcmp.lt.s32.totalorder %v383, 113
    %v1067 = vsel %vm1066, %v1051, %v1059
    %v1068 = vsel %vm1066, %v1053, %v1061
    %v1069 = vsel %vm1066, %v1055, %v1063
    %v1070 = vsel %vm1066, %v1057, %v1065
    %v1071 = vsel %vm1066, %v1059, %v1051
    %v1072 = vsel %vm1066, %v1061, %v1053
    %v1073 = vsel %vm1066, %v1063, %v1055
    %v1074 = vsel %vm1066, %v1065, %v1057
    %s1075 = scalar_lea.vmem [#allocation10], 6
    %v1076 = vld [vmem:[%s1075] ss:$8 sm:$0x3]
    %v1078 = vlaneseq
    %v1079 = vshrl.u32 %v1078, 7
    %v1080 = vsub.s32 0, %v1079
    %v1081 = vrot.slane %v1076, %v1080
    %v1082 = vlaneseq
    %v1083 = vshrl.u32 %v1082, 7
    %v1084 = vsub.s32 1, %v1083
    %v1085 = vrot.slane %v1076, %v1084
    %v1088 = vmul.f32 %v1067, %v1081
    %v1089 = vmul.f32 %v1071, %v1085
    %v1090 = vmul.f32 %v1068, %v1081
    %v1091 = vmul.f32 %v1072, %v1085
    %v1092 = vmul.f32 %v1069, %v1081
    %v1093 = vmul.f32 %v1073, %v1085
    %v1094 = vmul.f32 %v1070, %v1081
    %v1095 = vmul.f32 %v1074, %v1085
    %s1096 = sld [smem:[#allocation8 + $0x6]]
    %v1097 = vstv %s1096
    %v1098 = vmul.f32 %v1097, %v1088
    %v1099 = vmul.f32 %v1097, %v1089
    %v1100 = vmul.f32 %v1097, %v1090
    %v1101 = vmul.f32 %v1097, %v1091
    %v1102 = vmul.f32 %v1097, %v1092
    %v1103 = vmul.f32 %v1097, %v1093
    %v1104 = vmul.f32 %v1097, %v1094
    %v1105 = vmul.f32 %v1097, %v1095
    %v1106 = vadd.f32 %v988, %v1098
    %v1107 = vadd.f32 %v989, %v1099
    %v1108 = vadd.f32 %v990, %v1100
    %v1109 = vadd.f32 %v991, %v1101
    %v1110 = vadd.f32 %v992, %v1102
    %v1111 = vadd.f32 %v993, %v1103
    %v1112 = vadd.f32 %v994, %v1104
    %v1113 = vadd.f32 %v995, %v1105
    %s1114 = sld [smem:[#allocation8 + $0x86]]
    %v1115 = vstv %s1114
    %v1116 = vmul.f32 %v1115, %v1088
    %v1117 = vmul.f32 %v1115, %v1089
    %v1118 = vmul.f32 %v1115, %v1090
    %v1119 = vmul.f32 %v1115, %v1091
    %v1120 = vmul.f32 %v1115, %v1092
    %v1121 = vmul.f32 %v1115, %v1093
    %v1122 = vmul.f32 %v1115, %v1094
    %v1123 = vmul.f32 %v1115, %v1095
    %v1124 = vadd.f32 %v1006, %v1116
    %v1125 = vadd.f32 %v1007, %v1117
    %v1126 = vadd.f32 %v1008, %v1118
    %v1127 = vadd.f32 %v1009, %v1119
    %v1128 = vadd.f32 %v1010, %v1120
    %v1129 = vadd.f32 %v1011, %v1121
    %v1130 = vadd.f32 %v1012, %v1122
    %v1131 = vadd.f32 %v1013, %v1123
    %s1132 = sld [smem:[#allocation8 + $0x106]]
    %v1133 = vstv %s1132
    %v1134 = vmul.f32 %v1133, %v1088
    %v1135 = vmul.f32 %v1133, %v1089
    %v1136 = vmul.f32 %v1133, %v1090
    %v1137 = vmul.f32 %v1133, %v1091
    %v1138 = vmul.f32 %v1133, %v1092
    %v1139 = vmul.f32 %v1133, %v1093
    %v1140 = vmul.f32 %v1133, %v1094
    %v1141 = vmul.f32 %v1133, %v1095
    %v1142 = vadd.f32 %v1024, %v1134
    %v1143 = vadd.f32 %v1025, %v1135
    %v1144 = vadd.f32 %v1026, %v1136
    %v1145 = vadd.f32 %v1027, %v1137
    %v1146 = vadd.f32 %v1028, %v1138
    %v1147 = vadd.f32 %v1029, %v1139
    %v1148 = vadd.f32 %v1030, %v1140
    %v1149 = vadd.f32 %v1031, %v1141
    %s1150 = sld [smem:[#allocation8 + $0x186]]
    %v1151 = vstv %s1150
    %v1152 = vmul.f32 %v1151, %v1088
    %v1153 = vmul.f32 %v1151, %v1089
    %v1154 = vmul.f32 %v1151, %v1090
    %v1155 = vmul.f32 %v1151, %v1091
    %v1156 = vmul.f32 %v1151, %v1092
    %v1157 = vmul.f32 %v1151, %v1093
    %v1158 = vmul.f32 %v1151, %v1094
    %v1159 = vmul.f32 %v1151, %v1095
    %v1160 = vadd.f32 %v1042, %v1152
    %v1161 = vadd.f32 %v1043, %v1153
    %v1162 = vadd.f32 %v1044, %v1154
    %v1163 = vadd.f32 %v1045, %v1155
    %v1164 = vadd.f32 %v1046, %v1156
    %v1165 = vadd.f32 %v1047, %v1157
    %v1166 = vadd.f32 %v1048, %v1158
    %v1167 = vadd.f32 %v1049, %v1159
    %1168 = vrot.lane.b32.xlu0 %v358, 112
    %v1169 = vpop.permute.xlu0 %1168
    %1170 = vrot.lane.b32.xlu0 %v360, 112
    %v1171 = vpop.permute.xlu0 %1170
    %1172 = vrot.lane.b32.xlu0 %v362, 112
    %v1173 = vpop.permute.xlu0 %1172
    %1174 = vrot.lane.b32.xlu0 %v364, 112
    %v1175 = vpop.permute.xlu0 %1174
    %1176 = vrot.lane.b32.xlu0 %v359, 112
    %v1177 = vpop.permute.xlu0 %1176
    %1178 = vrot.lane.b32.xlu0 %v361, 112
    %v1179 = vpop.permute.xlu0 %1178
    %1180 = vrot.lane.b32.xlu0 %v363, 112
    %v1181 = vpop.permute.xlu0 %1180
    %1182 = vrot.lane.b32.xlu0 %v365, 112
    %v1183 = vpop.permute.xlu0 %1182
    %vm1184 = vcmp.lt.s32.totalorder %v383, 112
    %v1185 = vsel %vm1184, %v1169, %v1177
    %v1186 = vsel %vm1184, %v1171, %v1179
    %v1187 = vsel %vm1184, %v1173, %v1181
    %v1188 = vsel %vm1184, %v1175, %v1183
    %v1189 = vsel %vm1184, %v1177, %v1169
    %v1190 = vsel %vm1184, %v1179, %v1171
    %v1191 = vsel %vm1184, %v1181, %v1173
    %v1192 = vsel %vm1184, %v1183, %v1175
    %s1193 = scalar_lea.vmem [#allocation10], 7
    %v1194 = vld [vmem:[%s1193] ss:$8 sm:$0x3]
    %v1196 = vlaneseq
    %v1197 = vshrl.u32 %v1196, 7
    %v1198 = vsub.s32 0, %v1197
    %v1199 = vrot.slane %v1194, %v1198
    %v1200 = vlaneseq
    %v1201 = vshrl.u32 %v1200, 7
    %v1202 = vsub.s32 1, %v1201
    %v1203 = vrot.slane %v1194, %v1202
    %v1206 = vmul.f32 %v1185, %v1199
    %v1207 = vmul.f32 %v1189, %v1203
    %v1208 = vmul.f32 %v1186, %v1199
    %v1209 = vmul.f32 %v1190, %v1203
    %v1210 = vmul.f32 %v1187, %v1199
    %v1211 = vmul.f32 %v1191, %v1203
    %v1212 = vmul.f32 %v1188, %v1199
    %v1213 = vmul.f32 %v1192, %v1203
    %s1214 = sld [smem:[#allocation8 + $0x7]]
    %v1215 = vstv %s1214
    %v1216 = vmul.f32 %v1215, %v1206
    %v1217 = vmul.f32 %v1215, %v1207
    %v1218 = vmul.f32 %v1215, %v1208
    %v1219 = vmul.f32 %v1215, %v1209
    %v1220 = vmul.f32 %v1215, %v1210
    %v1221 = vmul.f32 %v1215, %v1211
    %v1222 = vmul.f32 %v1215, %v1212
    %v1223 = vmul.f32 %v1215, %v1213
    %v1224 = vadd.f32 %v1106, %v1216
    %v1225 = vadd.f32 %v1107, %v1217
    %v1226 = vadd.f32 %v1108, %v1218
    %v1227 = vadd.f32 %v1109, %v1219
    %v1228 = vadd.f32 %v1110, %v1220
    %v1229 = vadd.f32 %v1111, %v1221
    %v1230 = vadd.f32 %v1112, %v1222
    %v1231 = vadd.f32 %v1113, %v1223
    %s1232 = sld [smem:[#allocation8 + $0x87]]
    %v1233 = vstv %s1232
    %v1234 = vmul.f32 %v1233, %v1206
    %v1235 = vmul.f32 %v1233, %v1207
    %v1236 = vmul.f32 %v1233, %v1208
    %v1237 = vmul.f32 %v1233, %v1209
    %v1238 = vmul.f32 %v1233, %v1210
    %v1239 = vmul.f32 %v1233, %v1211
    %v1240 = vmul.f32 %v1233, %v1212
    %v1241 = vmul.f32 %v1233, %v1213
    %v1242 = vadd.f32 %v1124, %v1234
    %v1243 = vadd.f32 %v1125, %v1235
    %v1244 = vadd.f32 %v1126, %v1236
    %v1245 = vadd.f32 %v1127, %v1237
    %v1246 = vadd.f32 %v1128, %v1238
    %v1247 = vadd.f32 %v1129, %v1239
    %v1248 = vadd.f32 %v1130, %v1240
    %v1249 = vadd.f32 %v1131, %v1241
    %s1250 = sld [smem:[#allocation8 + $0x107]]
    %v1251 = vstv %s1250
    %v1252 = vmul.f32 %v1251, %v1206
    %v1253 = vmul.f32 %v1251, %v1207
    %v1254 = vmul.f32 %v1251, %v1208
    %v1255 = vmul.f32 %v1251, %v1209
    %v1256 = vmul.f32 %v1251, %v1210
    %v1257 = vmul.f32 %v1251, %v1211
    %v1258 = vmul.f32 %v1251, %v1212
    %v1259 = vmul.f32 %v1251, %v1213
    %v1260 = vadd.f32 %v1142, %v1252
    %v1261 = vadd.f32 %v1143, %v1253
    %v1262 = vadd.f32 %v1144, %v1254
    %v1263 = vadd.f32 %v1145, %v1255
    %v1264 = vadd.f32 %v1146, %v1256
    %v1265 = vadd.f32 %v1147, %v1257
    %v1266 = vadd.f32 %v1148, %v1258
    %v1267 = vadd.f32 %v1149, %v1259
    %s1268 = sld [smem:[#allocation8 + $0x187]]
    %v1269 = vstv %s1268
    %v1270 = vmul.f32 %v1269, %v1206
    %v1271 = vmul.f32 %v1269, %v1207
    %v1272 = vmul.f32 %v1269, %v1208
    %v1273 = vmul.f32 %v1269, %v1209
    %v1274 = vmul.f32 %v1269, %v1210
    %v1275 = vmul.f32 %v1269, %v1211
    %v1276 = vmul.f32 %v1269, %v1212
    %v1277 = vmul.f32 %v1269, %v1213
    %v1278 = vadd.f32 %v1160, %v1270
    %v1279 = vadd.f32 %v1161, %v1271
    %v1280 = vadd.f32 %v1162, %v1272
    %v1281 = vadd.f32 %v1163, %v1273
    %v1282 = vadd.f32 %v1164, %v1274
    %v1283 = vadd.f32 %v1165, %v1275
    %v1284 = vadd.f32 %v1166, %v1276
    %v1285 = vadd.f32 %v1167, %v1277
    %1286 = vrot.lane.b32.xlu0 %v358, 111
    %v1287 = vpop.permute.xlu0 %1286
    %1288 = vrot.lane.b32.xlu0 %v360, 111
    %v1289 = vpop.permute.xlu0 %1288
    %1290 = vrot.lane.b32.xlu0 %v362, 111
    %v1291 = vpop.permute.xlu0 %1290
    %1292 = vrot.lane.b32.xlu0 %v364, 111
    %v1293 = vpop.permute.xlu0 %1292
    %1294 = vrot.lane.b32.xlu0 %v359, 111
    %v1295 = vpop.permute.xlu0 %1294
    %1296 = vrot.lane.b32.xlu0 %v361, 111
    %v1297 = vpop.permute.xlu0 %1296
    %1298 = vrot.lane.b32.xlu0 %v363, 111
    %v1299 = vpop.permute.xlu0 %1298
    %1300 = vrot.lane.b32.xlu0 %v365, 111
    %v1301 = vpop.permute.xlu0 %1300
    %vm1302 = vcmp.lt.s32.totalorder %v383, 111
    %v1303 = vsel %vm1302, %v1287, %v1295
    %v1304 = vsel %vm1302, %v1289, %v1297
    %v1305 = vsel %vm1302, %v1291, %v1299
    %v1306 = vsel %vm1302, %v1293, %v1301
    %v1307 = vsel %vm1302, %v1295, %v1287
    %v1308 = vsel %vm1302, %v1297, %v1289
    %v1309 = vsel %vm1302, %v1299, %v1291
    %v1310 = vsel %vm1302, %v1301, %v1293
    %s1311 = scalar_lea.vmem [#allocation10], 16
    %v1312 = vld [vmem:[%s1311] ss:$8 sm:$0x3]
    %v1314 = vlaneseq
    %v1315 = vshrl.u32 %v1314, 7
    %v1316 = vsub.s32 0, %v1315
    %v1317 = vrot.slane %v1312, %v1316
    %v1318 = vlaneseq
    %v1319 = vshrl.u32 %v1318, 7
    %v1320 = vsub.s32 1, %v1319
    %v1321 = vrot.slane %v1312, %v1320
    %v1324 = vmul.f32 %v1303, %v1317
    %v1325 = vmul.f32 %v1307, %v1321
    %v1326 = vmul.f32 %v1304, %v1317
    %v1327 = vmul.f32 %v1308, %v1321
    %v1328 = vmul.f32 %v1305, %v1317
    %v1329 = vmul.f32 %v1309, %v1321
    %v1330 = vmul.f32 %v1306, %v1317
    %v1331 = vmul.f32 %v1310, %v1321
    %s1332 = sld [smem:[#allocation8 + $0x8]]
    %v1333 = vstv %s1332
    %v1334 = vmul.f32 %v1333, %v1324
    %v1335 = vmul.f32 %v1333, %v1325
    %v1336 = vmul.f32 %v1333, %v1326
    %v1337 = vmul.f32 %v1333, %v1327
    %v1338 = vmul.f32 %v1333, %v1328
    %v1339 = vmul.f32 %v1333, %v1329
    %v1340 = vmul.f32 %v1333, %v1330
    %v1341 = vmul.f32 %v1333, %v1331
    %v1342 = vadd.f32 %v1224, %v1334
    %v1343 = vadd.f32 %v1225, %v1335
    %v1344 = vadd.f32 %v1226, %v1336
    %v1345 = vadd.f32 %v1227, %v1337
    %v1346 = vadd.f32 %v1228, %v1338
    %v1347 = vadd.f32 %v1229, %v1339
    %v1348 = vadd.f32 %v1230, %v1340
    %v1349 = vadd.f32 %v1231, %v1341
    %s1350 = sld [smem:[#allocation8 + $0x88]]
    %v1351 = vstv %s1350
    %v1352 = vmul.f32 %v1351, %v1324
    %v1353 = vmul.f32 %v1351, %v1325
    %v1354 = vmul.f32 %v1351, %v1326
    %v1355 = vmul.f32 %v1351, %v1327
    %v1356 = vmul.f32 %v1351, %v1328
    %v1357 = vmul.f32 %v1351, %v1329
    %v1358 = vmul.f32 %v1351, %v1330
    %v1359 = vmul.f32 %v1351, %v1331
    %v1360 = vadd.f32 %v1242, %v1352
    %v1361 = vadd.f32 %v1243, %v1353
    %v1362 = vadd.f32 %v1244, %v1354
    %v1363 = vadd.f32 %v1245, %v1355
    %v1364 = vadd.f32 %v1246, %v1356
    %v1365 = vadd.f32 %v1247, %v1357
    %v1366 = vadd.f32 %v1248, %v1358
    %v1367 = vadd.f32 %v1249, %v1359
    %s1368 = sld [smem:[#allocation8 + $0x108]]
    %v1369 = vstv %s1368
    %v1370 = vmul.f32 %v1369, %v1324
    %v1371 = vmul.f32 %v1369, %v1325
    %v1372 = vmul.f32 %v1369, %v1326
    %v1373 = vmul.f32 %v1369, %v1327
    %v1374 = vmul.f32 %v1369, %v1328
    %v1375 = vmul.f32 %v1369, %v1329
    %v1376 = vmul.f32 %v1369, %v1330
    %v1377 = vmul.f32 %v1369, %v1331
    %v1378 = vadd.f32 %v1260, %v1370
    %v1379 = vadd.f32 %v1261, %v1371
    %v1380 = vadd.f32 %v1262, %v1372
    %v1381 = vadd.f32 %v1263, %v1373
    %v1382 = vadd.f32 %v1264, %v1374
    %v1383 = vadd.f32 %v1265, %v1375
    %v1384 = vadd.f32 %v1266, %v1376
    %v1385 = vadd.f32 %v1267, %v1377
    %s1386 = sld [smem:[#allocation8 + $0x188]]
    %v1387 = vstv %s1386
    %v1388 = vmul.f32 %v1387, %v1324
    %v1389 = vmul.f32 %v1387, %v1325
    %v1390 = vmul.f32 %v1387, %v1326
    %v1391 = vmul.f32 %v1387, %v1327
    %v1392 = vmul.f32 %v1387, %v1328
    %v1393 = vmul.f32 %v1387, %v1329
    %v1394 = vmul.f32 %v1387, %v1330
    %v1395 = vmul.f32 %v1387, %v1331
    %v1396 = vadd.f32 %v1278, %v1388
    %v1397 = vadd.f32 %v1279, %v1389
    %v1398 = vadd.f32 %v1280, %v1390
    %v1399 = vadd.f32 %v1281, %v1391
    %v1400 = vadd.f32 %v1282, %v1392
    %v1401 = vadd.f32 %v1283, %v1393
    %v1402 = vadd.f32 %v1284, %v1394
    %v1403 = vadd.f32 %v1285, %v1395
    %v1404 = vadd.f32 %v1342, %v1343
    %1405 = vadd.xlane.f32.xlu0 %v1404
    %v1406 = vpop.xlane.xlu0 %1405
    %v1407 = vadd.f32 %v1344, %v1345
    %1408 = vadd.xlane.f32.xlu0 %v1407
    %v1409 = vpop.xlane.xlu0 %1408
    %v1410 = vadd.f32 %v1346, %v1347
    %1411 = vadd.xlane.f32.xlu0 %v1410
    %v1412 = vpop.xlane.xlu0 %1411
    %v1413 = vadd.f32 %v1348, %v1349
    %1414 = vadd.xlane.f32.xlu0 %v1413
    %v1415 = vpop.xlane.xlu0 %1414
    %v1416 = vadd.f32 %v1406, %v1412
    %v1417 = vadd.f32 %v1409, %v1415
    %v1418 = vmul.f32 %v1416, 0.001953125
    %v1419 = vmul.f32 %v1417, 0.001953125
    %v1420 = vsub.f32 %v1342, %v1418
    %v1421 = vsub.f32 %v1343, %v1418
    %v1422 = vsub.f32 %v1344, %v1419
    %v1423 = vsub.f32 %v1345, %v1419
    %v1424 = vsub.f32 %v1346, %v1418
    %v1425 = vsub.f32 %v1347, %v1418
    %v1426 = vsub.f32 %v1348, %v1419
    %v1427 = vsub.f32 %v1349, %v1419
    %v1428 = vmul.f32 %v1420, %v1420
    %v1429 = vmul.f32 %v1421, %v1421
    %v1430 = vmul.f32 %v1422, %v1422
    %v1431 = vmul.f32 %v1423, %v1423
    %v1432 = vmul.f32 %v1424, %v1424
    %v1433 = vmul.f32 %v1425, %v1425
    %v1434 = vmul.f32 %v1426, %v1426
    %v1435 = vmul.f32 %v1427, %v1427
    %v1436 = vadd.f32 %v1428, %v1429
    %1437 = vadd.xlane.f32.xlu0 %v1436
    %v1438 = vpop.xlane.xlu0 %1437
    %v1439 = vadd.f32 %v1430, %v1431
    %1440 = vadd.xlane.f32.xlu0 %v1439
    %v1441 = vpop.xlane.xlu0 %1440
    %v1442 = vadd.f32 %v1432, %v1433
    %1443 = vadd.xlane.f32.xlu0 %v1442
    %v1444 = vpop.xlane.xlu0 %1443
    %v1445 = vadd.f32 %v1434, %v1435
    %1446 = vadd.xlane.f32.xlu0 %v1445
    %v1447 = vpop.xlane.xlu0 %1446
    %v1448 = vadd.f32 %v1438, %v1444
    %v1449 = vadd.f32 %v1441, %v1447
    %v1450 = vmul.f32 %v1448, 0.001953125
    %v1451 = vmul.f32 %v1449, 0.001953125
    %v1452 = vadd.f32 %v1450, 1e-05
    %v1453 = vadd.f32 %v1451, 1e-05
    %v1454 = vrsqrt.pop %v1452
    %v1455 = vrsqrt.pop %v1453
    %v1456 = vmul.f32 %v1420, %v1454
    %v1457 = vmul.f32 %v1421, %v1454
    %v1458 = vmul.f32 %v1422, %v1455
    %v1459 = vmul.f32 %v1423, %v1455
    %v1460 = vmul.f32 %v1424, %v1454
    %v1461 = vmul.f32 %v1425, %v1454
    %v1462 = vmul.f32 %v1426, %v1455
    %v1463 = vmul.f32 %v1427, %v1455
    %v1464 = vmax.f32 %v1456, 0.0
    %v1465 = vmax.f32 %v1457, 0.0
    %v1466 = vmax.f32 %v1458, 0.0
    %v1467 = vmax.f32 %v1459, 0.0
    %v1468 = vmax.f32 %v1460, 0.0
    %v1469 = vmax.f32 %v1461, 0.0
    %v1470 = vmax.f32 %v1462, 0.0
    %v1471 = vmax.f32 %v1463, 0.0
    %v1472 = vld [vmem:[#allocation9] sm:$0xff]
    %v1473 = vld [vmem:[#allocation9 + $0x8] sm:$0xff]
    %v1474 = vadd.f32 %v1360, %v1361
    %1475 = vadd.xlane.f32.xlu0 %v1474
    %v1476 = vpop.xlane.xlu0 %1475
    %v1477 = vadd.f32 %v1362, %v1363
    %1478 = vadd.xlane.f32.xlu0 %v1477
    %v1479 = vpop.xlane.xlu0 %1478
    %v1480 = vadd.f32 %v1364, %v1365
    %1481 = vadd.xlane.f32.xlu0 %v1480
    %v1482 = vpop.xlane.xlu0 %1481
    %v1483 = vadd.f32 %v1366, %v1367
    %1484 = vadd.xlane.f32.xlu0 %v1483
    %v1485 = vpop.xlane.xlu0 %1484
    %v1486 = vadd.f32 %v1476, %v1482
    %v1487 = vadd.f32 %v1479, %v1485
    %v1488 = vmul.f32 %v1486, 0.001953125
    %v1489 = vmul.f32 %v1487, 0.001953125
    %v1490 = vsub.f32 %v1360, %v1488
    %v1491 = vsub.f32 %v1361, %v1488
    %v1492 = vsub.f32 %v1362, %v1489
    %v1493 = vsub.f32 %v1363, %v1489
    %v1494 = vsub.f32 %v1364, %v1488
    %v1495 = vsub.f32 %v1365, %v1488
    %v1496 = vsub.f32 %v1366, %v1489
    %v1497 = vsub.f32 %v1367, %v1489
    %v1498 = vmul.f32 %v1490, %v1490
    %v1499 = vmul.f32 %v1491, %v1491
    %v1500 = vmul.f32 %v1492, %v1492
    %v1501 = vmul.f32 %v1493, %v1493
    %v1502 = vmul.f32 %v1494, %v1494
    %v1503 = vmul.f32 %v1495, %v1495
    %v1504 = vmul.f32 %v1496, %v1496
    %v1505 = vmul.f32 %v1497, %v1497
    %v1506 = vadd.f32 %v1498, %v1499
    %1507 = vadd.xlane.f32.xlu0 %v1506
    %v1508 = vpop.xlane.xlu0 %1507
    %v1509 = vadd.f32 %v1500, %v1501
    %1510 = vadd.xlane.f32.xlu0 %v1509
    %v1511 = vpop.xlane.xlu0 %1510
    %v1512 = vadd.f32 %v1502, %v1503
    %1513 = vadd.xlane.f32.xlu0 %v1512
    %v1514 = vpop.xlane.xlu0 %1513
    %v1515 = vadd.f32 %v1504, %v1505
    %1516 = vadd.xlane.f32.xlu0 %v1515
    %v1517 = vpop.xlane.xlu0 %1516
    %v1518 = vadd.f32 %v1508, %v1514
    %v1519 = vadd.f32 %v1511, %v1517
    %v1520 = vmul.f32 %v1518, 0.001953125
    %v1521 = vmul.f32 %v1519, 0.001953125
    %v1522 = vadd.f32 %v1520, 1e-05
    %v1523 = vadd.f32 %v1521, 1e-05
    %v1524 = vrsqrt.pop %v1522
    %v1525 = vrsqrt.pop %v1523
    %v1526 = vmul.f32 %v1490, %v1524
    %v1527 = vmul.f32 %v1491, %v1524
    %v1528 = vmul.f32 %v1492, %v1525
    %v1529 = vmul.f32 %v1493, %v1525
    %v1530 = vmul.f32 %v1494, %v1524
    %v1531 = vmul.f32 %v1495, %v1524
    %v1532 = vmul.f32 %v1496, %v1525
    %v1533 = vmul.f32 %v1497, %v1525
    %v1534 = vmax.f32 %v1526, 0.0
    %v1535 = vmax.f32 %v1527, 0.0
    %v1536 = vmax.f32 %v1528, 0.0
    %v1537 = vmax.f32 %v1529, 0.0
    %v1538 = vmax.f32 %v1530, 0.0
    %v1539 = vmax.f32 %v1531, 0.0
    %v1540 = vmax.f32 %v1532, 0.0
    %v1541 = vmax.f32 %v1533, 0.0
    %s1542 = scalar_lea.vmem [#allocation9], 16
    %v1543 = vld [vmem:[%s1542] sm:$0xff]
    %v1544 = vld [vmem:[%s1542 + $0x8] sm:$0xff]
    %v1546 = vsel %vm97, %v1543, 0
    %v1549 = vsel %vm97, %v1544, 0
    %1551 = vmatprep.subr.mxu0 0.0
    %1552 = vmatpush1.msra.mxu0 0.0
    %1553 = vmatprep.subr.mxu0 0.0
    %1554 = vmatpush1.msra.mxu0 0.0
    %1555 = vmatprep.subr.mxu0 0.0
    %1556 = vmatpush1.msra.mxu0 0.0
    %1557 = vmatprep.subr.mxu0 0.0
    %1558 = vmatpush1.msra.mxu0 0.0
    %1559 = vmatprep.subr.mxu0 0.0
    %1560 = vmatpush1.msra.mxu0 0.0
    %1561 = vmatprep.subr.mxu0 0.0
    %1562 = vmatpush1.msra.mxu0 0.0
    %1563 = vmatprep.subr.mxu0 0.0
    %1564 = vmatpush1.msra.mxu0 0.0
    %1565 = vmatprep.subr.mxu0 0.0
    %1566 = vmatpush1.msra.mxu0 0.0
    %1567 = vmatprep.subr.mxu0 0.0
    %1568 = vmatpush1.msra.mxu0 0.0
    %1569 = vmatprep.subr.mxu0 0.0
    %1570 = vmatpush1.msra.mxu0 0.0
    %1571 = vmatprep.subr.mxu0 0.0
    %1572 = vmatpush1.msra.mxu0 0.0
    %1573 = vmatprep.subr.mxu0 0.0
    %1574 = vmatpush1.msra.mxu0 0.0
    %1575 = vmatprep.subr.mxu0 0.0
    %1576 = vmatpush1.msra.mxu0 0.0
    %1577 = vmatprep.subr.mxu0 0.0
    %1578 = vmatpush1.msra.mxu0 0.0
    %1579 = vmatprep.subr.mxu0 %v1537
    %1580 = vmatpush1.msra.mxu0 %v1536
    %1581 = vmatprep.subr.mxu0 %v1535
    %1582 = vmatpush1.msra.mxu0 %v1534
    %1583 = vmatprep.subr.mxu0 0.0
    %1584 = vmatpush2.msra.mxu0 0.0
    %1585 = vmatprep.subr.mxu0 0.0
    %1586 = vmatpush2.msra.mxu0 0.0
    %1587 = vmatprep.subr.mxu0 0.0
    %1588 = vmatpush2.msra.mxu0 0.0
    %1589 = vmatprep.subr.mxu0 0.0
    %1590 = vmatpush2.msra.mxu0 0.0
    %1591 = vmatprep.subr.mxu0 0.0
    %1592 = vmatpush2.msra.mxu0 0.0
    %1593 = vmatprep.subr.mxu0 0.0
    %1594 = vmatpush2.msra.mxu0 0.0
    %1595 = vmatprep.subr.mxu0 0.0
    %1596 = vmatpush2.msra.mxu0 0.0
    %1597 = vmatprep.subr.mxu0 0.0
    %1598 = vmatpush2.msra.mxu0 0.0
    %1599 = vmatprep.subr.mxu0 0.0
    %1600 = vmatpush2.msra.mxu0 0.0
    %1601 = vmatprep.subr.mxu0 0.0
    %1602 = vmatpush2.msra.mxu0 0.0
    %1603 = vmatprep.subr.mxu0 0.0
    %1604 = vmatpush2.msra.mxu0 0.0
    %1605 = vmatprep.subr.mxu0 0.0
    %1606 = vmatpush2.msra.mxu0 0.0
    %1607 = vmatprep.subr.mxu0 0.0
    %1608 = vmatpush2.msra.mxu0 0.0
    %1609 = vmatprep.subr.mxu0 0.0
    %1610 = vmatpush2.msra.mxu0 0.0
    %1611 = vmatprep.subr.mxu0 0.0
    %1612 = vmatpush2.msra.mxu0 0.0
    %1613 = vmatprep.subr.mxu0 0.0
    %1614 = vmatpush2.msra.mxu0 0.0
    %1615 = vmatprep.mubr.f32.mxu0 0.0
    %1616 = vmatmul.mubr.f32.gmra.mxu0 %v1546
    %v1617 = vpop.f32.mrf.mxu0
    %v1618 = vadd.f32 0.0, %v1617
    %v1619 = vpop.f32.mrf.mxu0
    %v1620 = vadd.f32 0.0, %v1619
    %1621 = vmatprep.mubr.f32.mxu0 0.0
    %1622 = vmatmul.mubr.f32.gmra.mxu0 %v1549
    %v1623 = vpop.f32.mrf.mxu0
    %v1624 = vadd.f32 0.0, %v1623
    %v1625 = vpop.f32.mrf.mxu0
    %v1626 = vadd.f32 0.0, %v1625
    %1627 = vdwg.mxu0
    %1628 = vmatprep.subr.mxu0 0.0
    %1629 = vmatpush1.msra.mxu0 0.0
    %1630 = vmatprep.subr.mxu0 0.0
    %1631 = vmatpush1.msra.mxu0 0.0
    %1632 = vmatprep.subr.mxu0 0.0
    %1633 = vmatpush1.msra.mxu0 0.0
    %1634 = vmatprep.subr.mxu0 0.0
    %1635 = vmatpush1.msra.mxu0 0.0
    %1636 = vmatprep.subr.mxu0 0.0
    %1637 = vmatpush1.msra.mxu0 0.0
    %1638 = vmatprep.subr.mxu0 0.0
    %1639 = vmatpush1.msra.mxu0 0.0
    %1640 = vmatprep.subr.mxu0 0.0
    %1641 = vmatpush1.msra.mxu0 0.0
    %1642 = vmatprep.subr.mxu0 0.0
    %1643 = vmatpush1.msra.mxu0 0.0
    %1644 = vmatprep.subr.mxu0 0.0
    %1645 = vmatpush1.msra.mxu0 0.0
    %1646 = vmatprep.subr.mxu0 0.0
    %1647 = vmatpush1.msra.mxu0 0.0
    %1648 = vmatprep.subr.mxu0 0.0
    %1649 = vmatpush1.msra.mxu0 0.0
    %1650 = vmatprep.subr.mxu0 0.0
    %1651 = vmatpush1.msra.mxu0 0.0
    %1652 = vmatprep.subr.mxu0 0.0
    %1653 = vmatpush1.msra.mxu0 0.0
    %1654 = vmatprep.subr.mxu0 0.0
    %1655 = vmatpush1.msra.mxu0 0.0
    %1656 = vmatprep.subr.mxu0 %v1541
    %1657 = vmatpush1.msra.mxu0 %v1540
    %1658 = vmatprep.subr.mxu0 %v1539
    %1659 = vmatpush1.msra.mxu0 %v1538
    %1660 = vmatprep.subr.mxu0 0.0
    %1661 = vmatpush2.msra.mxu0 0.0
    %1662 = vmatprep.subr.mxu0 0.0
    %1663 = vmatpush2.msra.mxu0 0.0
    %1664 = vmatprep.subr.mxu0 0.0
    %1665 = vmatpush2.msra.mxu0 0.0
    %1666 = vmatprep.subr.mxu0 0.0
    %1667 = vmatpush2.msra.mxu0 0.0
    %1668 = vmatprep.subr.mxu0 0.0
    %1669 = vmatpush2.msra.mxu0 0.0
    %1670 = vmatprep.subr.mxu0 0.0
    %1671 = vmatpush2.msra.mxu0 0.0
    %1672 = vmatprep.subr.mxu0 0.0
    %1673 = vmatpush2.msra.mxu0 0.0
    %1674 = vmatprep.subr.mxu0 0.0
    %1675 = vmatpush2.msra.mxu0 0.0
    %1676 = vmatprep.subr.mxu0 0.0
    %1677 = vmatpush2.msra.mxu0 0.0
    %1678 = vmatprep.subr.mxu0 0.0
    %1679 = vmatpush2.msra.mxu0 0.0
    %1680 = vmatprep.subr.mxu0 0.0
    %1681 = vmatpush2.msra.mxu0 0.0
    %1682 = vmatprep.subr.mxu0 0.0
    %1683 = vmatpush2.msra.mxu0 0.0
    %1684 = vmatprep.subr.mxu0 0.0
    %1685 = vmatpush2.msra.mxu0 0.0
    %1686 = vmatprep.subr.mxu0 0.0
    %1687 = vmatpush2.msra.mxu0 0.0
    %1688 = vmatprep.subr.mxu0 0.0
    %1689 = vmatpush2.msra.mxu0 0.0
    %1690 = vmatprep.subr.mxu0 0.0
    %1691 = vmatpush2.msra.mxu0 0.0
    %1692 = vmatprep.mubr.f32.mxu0 0.0
    %1693 = vmatmul.mubr.f32.gmra.mxu0 %v1546
    %v1694 = vpop.f32.mrf.mxu0
    %v1695 = vadd.f32 0.0, %v1694
    %v1696 = vpop.f32.mrf.mxu0
    %v1697 = vadd.f32 0.0, %v1696
    %1698 = vmatprep.mubr.f32.mxu0 0.0
    %1699 = vmatmul.mubr.f32.gmra.mxu0 %v1549
    %v1700 = vpop.f32.mrf.mxu0
    %v1701 = vadd.f32 0.0, %v1700
    %v1702 = vpop.f32.mrf.mxu0
    %v1703 = vadd.f32 0.0, %v1702
    %1704 = vdwg.mxu0
    %v1706 = vsel %vm97, %v1472, 0
    %v1709 = vsel %vm97, %v1473, 0
    %1711 = vmatprep.subr.mxu0 0.0
    %1712 = vmatpush1.msra.mxu0 0.0
    %1713 = vmatprep.subr.mxu0 0.0
    %1714 = vmatpush1.msra.mxu0 0.0
    %1715 = vmatprep.subr.mxu0 0.0
    %1716 = vmatpush1.msra.mxu0 0.0
    %1717 = vmatprep.subr.mxu0 0.0
    %1718 = vmatpush1.msra.mxu0 0.0
    %1719 = vmatprep.subr.mxu0 0.0
    %1720 = vmatpush1.msra.mxu0 0.0
    %1721 = vmatprep.subr.mxu0 0.0
    %1722 = vmatpush1.msra.mxu0 0.0
    %1723 = vmatprep.subr.mxu0 0.0
    %1724 = vmatpush1.msra.mxu0 0.0
    %1725 = vmatprep.subr.mxu0 0.0
    %1726 = vmatpush1.msra.mxu0 0.0
    %1727 = vmatprep.subr.mxu0 0.0
    %1728 = vmatpush1.msra.mxu0 0.0
    %1729 = vmatprep.subr.mxu0 0.0
    %1730 = vmatpush1.msra.mxu0 0.0
    %1731 = vmatprep.subr.mxu0 0.0
    %1732 = vmatpush1.msra.mxu0 0.0
    %1733 = vmatprep.subr.mxu0 0.0
    %1734 = vmatpush1.msra.mxu0 0.0
    %1735 = vmatprep.subr.mxu0 0.0
    %1736 = vmatpush1.msra.mxu0 0.0
    %1737 = vmatprep.subr.mxu0 0.0
    %1738 = vmatpush1.msra.mxu0 0.0
    %1739 = vmatprep.subr.mxu0 %v1467
    %1740 = vmatpush1.msra.mxu0 %v1466
    %1741 = vmatprep.subr.mxu0 %v1465
    %1742 = vmatpush1.msra.mxu0 %v1464
    %1743 = vmatprep.subr.mxu0 0.0
    %1744 = vmatpush2.msra.mxu0 0.0
    %1745 = vmatprep.subr.mxu0 0.0
    %1746 = vmatpush2.msra.mxu0 0.0
    %1747 = vmatprep.subr.mxu0 0.0
    %1748 = vmatpush2.msra.mxu0 0.0
    %1749 = vmatprep.subr.mxu0 0.0
    %1750 = vmatpush2.msra.mxu0 0.0
    %1751 = vmatprep.subr.mxu0 0.0
    %1752 = vmatpush2.msra.mxu0 0.0
    %1753 = vmatprep.subr.mxu0 0.0
    %1754 = vmatpush2.msra.mxu0 0.0
    %1755 = vmatprep.subr.mxu0 0.0
    %1756 = vmatpush2.msra.mxu0 0.0
    %1757 = vmatprep.subr.mxu0 0.0
    %1758 = vmatpush2.msra.mxu0 0.0
    %1759 = vmatprep.subr.mxu0 0.0
    %1760 = vmatpush2.msra.mxu0 0.0
    %1761 = vmatprep.subr.mxu0 0.0
    %1762 = vmatpush2.msra.mxu0 0.0
    %1763 = vmatprep.subr.mxu0 0.0
    %1764 = vmatpush2.msra.mxu0 0.0
    %1765 = vmatprep.subr.mxu0 0.0
    %1766 = vmatpush2.msra.mxu0 0.0
    %1767 = vmatprep.subr.mxu0 0.0
    %1768 = vmatpush2.msra.mxu0 0.0
    %1769 = vmatprep.subr.mxu0 0.0
    %1770 = vmatpush2.msra.mxu0 0.0
    %1771 = vmatprep.subr.mxu0 0.0
    %1772 = vmatpush2.msra.mxu0 0.0
    %1773 = vmatprep.subr.mxu0 0.0
    %1774 = vmatpush2.msra.mxu0 0.0
    %1775 = vmatprep.mubr.f32.mxu0 0.0
    %1776 = vmatmul.mubr.f32.gmra.mxu0 %v1706
    %v1777 = vpop.f32.mrf.mxu0
    %v1778 = vadd.f32 %v1618, %v1777
    %v1779 = vpop.f32.mrf.mxu0
    %v1780 = vadd.f32 %v1620, %v1779
    %1781 = vmatprep.mubr.f32.mxu0 0.0
    %1782 = vmatmul.mubr.f32.gmra.mxu0 %v1709
    %v1783 = vpop.f32.mrf.mxu0
    %v1784 = vadd.f32 %v1624, %v1783
    %v1785 = vpop.f32.mrf.mxu0
    %v1786 = vadd.f32 %v1626, %v1785
    %1787 = vdwg.mxu0
    %1788 = vmatprep.subr.mxu0 0.0
    %1789 = vmatpush1.msra.mxu0 0.0
    %1790 = vmatprep.subr.mxu0 0.0
    %1791 = vmatpush1.msra.mxu0 0.0
    %1792 = vmatprep.subr.mxu0 0.0
    %1793 = vmatpush1.msra.mxu0 0.0
    %1794 = vmatprep.subr.mxu0 0.0
    %1795 = vmatpush1.msra.mxu0 0.0
    %1796 = vmatprep.subr.mxu0 0.0
    %1797 = vmatpush1.msra.mxu0 0.0
    %1798 = vmatprep.subr.mxu0 0.0
    %1799 = vmatpush1.msra.mxu0 0.0
    %1800 = vmatprep.subr.mxu0 0.0
    %1801 = vmatpush1.msra.mxu0 0.0
    %1802 = vmatprep.subr.mxu0 0.0
    %1803 = vmatpush1.msra.mxu0 0.0
    %1804 = vmatprep.subr.mxu0 0.0
    %1805 = vmatpush1.msra.mxu0 0.0
    %1806 = vmatprep.subr.mxu0 0.0
    %1807 = vmatpush1.msra.mxu0 0.0
    %1808 = vmatprep.subr.mxu0 0.0
    %1809 = vmatpush1.msra.mxu0 0.0
    %1810 = vmatprep.subr.mxu0 0.0
    %1811 = vmatpush1.msra.mxu0 0.0
    %1812 = vmatprep.subr.mxu0 0.0
    %1813 = vmatpush1.msra.mxu0 0.0
    %1814 = vmatprep.subr.mxu0 0.0
    %1815 = vmatpush1.msra.mxu0 0.0
    %1816 = vmatprep.subr.mxu0 %v1471
    %1817 = vmatpush1.msra.mxu0 %v1470
    %1818 = vmatprep.subr.mxu0 %v1469
    %1819 = vmatpush1.msra.mxu0 %v1468
    %1820 = vmatprep.subr.mxu0 0.0
    %1821 = vmatpush2.msra.mxu0 0.0
    %1822 = vmatprep.subr.mxu0 0.0
    %1823 = vmatpush2.msra.mxu0 0.0
    %1824 = vmatprep.subr.mxu0 0.0
    %1825 = vmatpush2.msra.mxu0 0.0
    %1826 = vmatprep.subr.mxu0 0.0
    %1827 = vmatpush2.msra.mxu0 0.0
    %1828 = vmatprep.subr.mxu0 0.0
    %1829 = vmatpush2.msra.mxu0 0.0
    %1830 = vmatprep.subr.mxu0 0.0
    %1831 = vmatpush2.msra.mxu0 0.0
    %1832 = vmatprep.subr.mxu0 0.0
    %1833 = vmatpush2.msra.mxu0 0.0
    %1834 = vmatprep.subr.mxu0 0.0
    %1835 = vmatpush2.msra.mxu0 0.0
    %1836 = vmatprep.subr.mxu0 0.0
    %1837 = vmatpush2.msra.mxu0 0.0
    %1838 = vmatprep.subr.mxu0 0.0
    %1839 = vmatpush2.msra.mxu0 0.0
    %1840 = vmatprep.subr.mxu0 0.0
    %1841 = vmatpush2.msra.mxu0 0.0
    %1842 = vmatprep.subr.mxu0 0.0
    %1843 = vmatpush2.msra.mxu0 0.0
    %1844 = vmatprep.subr.mxu0 0.0
    %1845 = vmatpush2.msra.mxu0 0.0
    %1846 = vmatprep.subr.mxu0 0.0
    %1847 = vmatpush2.msra.mxu0 0.0
    %1848 = vmatprep.subr.mxu0 0.0
    %1849 = vmatpush2.msra.mxu0 0.0
    %1850 = vmatprep.subr.mxu0 0.0
    %1851 = vmatpush2.msra.mxu0 0.0
    %1852 = vmatprep.mubr.f32.mxu0 0.0
    %1853 = vmatmul.mubr.f32.gmra.mxu0 %v1706
    %v1854 = vpop.f32.mrf.mxu0
    %v1855 = vadd.f32 %v1695, %v1854
    %v1856 = vpop.f32.mrf.mxu0
    %v1857 = vadd.f32 %v1697, %v1856
    %1858 = vmatprep.mubr.f32.mxu0 0.0
    %1859 = vmatmul.mubr.f32.gmra.mxu0 %v1709
    %v1860 = vpop.f32.mrf.mxu0
    %v1861 = vadd.f32 %v1701, %v1860
    %v1862 = vpop.f32.mrf.mxu0
    %v1863 = vadd.f32 %v1703, %v1862
    %1864 = vdwg.mxu0
    %v1865 = vadd.f32 %v1378, %v1379
    %1866 = vadd.xlane.f32.xlu0 %v1865
    %v1867 = vpop.xlane.xlu0 %1866
    %v1868 = vadd.f32 %v1380, %v1381
    %1869 = vadd.xlane.f32.xlu0 %v1868
    %v1870 = vpop.xlane.xlu0 %1869
    %v1871 = vadd.f32 %v1382, %v1383
    %1872 = vadd.xlane.f32.xlu0 %v1871
    %v1873 = vpop.xlane.xlu0 %1872
    %v1874 = vadd.f32 %v1384, %v1385
    %1875 = vadd.xlane.f32.xlu0 %v1874
    %v1876 = vpop.xlane.xlu0 %1875
    %v1877 = vadd.f32 %v1867, %v1873
    %v1878 = vadd.f32 %v1870, %v1876
    %v1879 = vmul.f32 %v1877, 0.001953125
    %v1880 = vmul.f32 %v1878, 0.001953125
    %v1881 = vsub.f32 %v1378, %v1879
    %v1882 = vsub.f32 %v1379, %v1879
    %v1883 = vsub.f32 %v1380, %v1880
    %v1884 = vsub.f32 %v1381, %v1880
    %v1885 = vsub.f32 %v1382, %v1879
    %v1886 = vsub.f32 %v1383, %v1879
    %v1887 = vsub.f32 %v1384, %v1880
    %v1888 = vsub.f32 %v1385, %v1880
    %v1889 = vmul.f32 %v1881, %v1881
    %v1890 = vmul.f32 %v1882, %v1882
    %v1891 = vmul.f32 %v1883, %v1883
    %v1892 = vmul.f32 %v1884, %v1884
    %v1893 = vmul.f32 %v1885, %v1885
    %v1894 = vmul.f32 %v1886, %v1886
    %v1895 = vmul.f32 %v1887, %v1887
    %v1896 = vmul.f32 %v1888, %v1888
    %v1897 = vadd.f32 %v1889, %v1890
    %1898 = vadd.xlane.f32.xlu0 %v1897
    %v1899 = vpop.xlane.xlu0 %1898
    %v1900 = vadd.f32 %v1891, %v1892
    %1901 = vadd.xlane.f32.xlu0 %v1900
    %v1902 = vpop.xlane.xlu0 %1901
    %v1903 = vadd.f32 %v1893, %v1894
    %1904 = vadd.xlane.f32.xlu0 %v1903
    %v1905 = vpop.xlane.xlu0 %1904
    %v1906 = vadd.f32 %v1895, %v1896
    %1907 = vadd.xlane.f32.xlu0 %v1906
    %v1908 = vpop.xlane.xlu0 %1907
    %v1909 = vadd.f32 %v1899, %v1905
    %v1910 = vadd.f32 %v1902, %v1908
    %v1911 = vmul.f32 %v1909, 0.001953125
    %v1912 = vmul.f32 %v1910, 0.001953125
    %v1913 = vadd.f32 %v1911, 1e-05
    %v1914 = vadd.f32 %v1912, 1e-05
    %v1915 = vrsqrt.pop %v1913
    %v1916 = vrsqrt.pop %v1914
    %v1917 = vmul.f32 %v1881, %v1915
    %v1918 = vmul.f32 %v1882, %v1915
    %v1919 = vmul.f32 %v1883, %v1916
    %v1920 = vmul.f32 %v1884, %v1916
    %v1921 = vmul.f32 %v1885, %v1915
    %v1922 = vmul.f32 %v1886, %v1915
    %v1923 = vmul.f32 %v1887, %v1916
    %v1924 = vmul.f32 %v1888, %v1916
    %v1925 = vmax.f32 %v1917, 0.0
    %v1926 = vmax.f32 %v1918, 0.0
    %v1927 = vmax.f32 %v1919, 0.0
    %v1928 = vmax.f32 %v1920, 0.0
    %v1929 = vmax.f32 %v1921, 0.0
    %v1930 = vmax.f32 %v1922, 0.0
    %v1931 = vmax.f32 %v1923, 0.0
    %v1932 = vmax.f32 %v1924, 0.0
    %s1933 = scalar_lea.vmem [#allocation9], 32
    %v1934 = vld [vmem:[%s1933] sm:$0xff]
    %v1935 = vld [vmem:[%s1933 + $0x8] sm:$0xff]
    %v1937 = vsel %vm97, %v1934, 0
    %v1940 = vsel %vm97, %v1935, 0
    %1942 = vmatprep.subr.mxu0 0.0
    %1943 = vmatpush1.msra.mxu0 0.0
    %1944 = vmatprep.subr.mxu0 0.0
    %1945 = vmatpush1.msra.mxu0 0.0
    %1946 = vmatprep.subr.mxu0 0.0
    %1947 = vmatpush1.msra.mxu0 0.0
    %1948 = vmatprep.subr.mxu0 0.0
    %1949 = vmatpush1.msra.mxu0 0.0
    %1950 = vmatprep.subr.mxu0 0.0
    %1951 = vmatpush1.msra.mxu0 0.0
    %1952 = vmatprep.subr.mxu0 0.0
    %1953 = vmatpush1.msra.mxu0 0.0
    %1954 = vmatprep.subr.mxu0 0.0
    %1955 = vmatpush1.msra.mxu0 0.0
    %1956 = vmatprep.subr.mxu0 0.0
    %1957 = vmatpush1.msra.mxu0 0.0
    %1958 = vmatprep.subr.mxu0 0.0
    %1959 = vmatpush1.msra.mxu0 0.0
    %1960 = vmatprep.subr.mxu0 0.0
    %1961 = vmatpush1.msra.mxu0 0.0
    %1962 = vmatprep.subr.mxu0 0.0
    %1963 = vmatpush1.msra.mxu0 0.0
    %1964 = vmatprep.subr.mxu0 0.0
    %1965 = vmatpush1.msra.mxu0 0.0
    %1966 = vmatprep.subr.mxu0 0.0
    %1967 = vmatpush1.msra.mxu0 0.0
    %1968 = vmatprep.subr.mxu0 0.0
    %1969 = vmatpush1.msra.mxu0 0.0
    %1970 = vmatprep.subr.mxu0 %v1928
    %1971 = vmatpush1.msra.mxu0 %v1927
    %1972 = vmatprep.subr.mxu0 %v1926
    %1973 = vmatpush1.msra.mxu0 %v1925
    %1974 = vmatprep.subr.mxu0 0.0
    %1975 = vmatpush2.msra.mxu0 0.0
    %1976 = vmatprep.subr.mxu0 0.0
    %1977 = vmatpush2.msra.mxu0 0.0
    %1978 = vmatprep.subr.mxu0 0.0
    %1979 = vmatpush2.msra.mxu0 0.0
    %1980 = vmatprep.subr.mxu0 0.0
    %1981 = vmatpush2.msra.mxu0 0.0
    %1982 = vmatprep.subr.mxu0 0.0
    %1983 = vmatpush2.msra.mxu0 0.0
    %1984 = vmatprep.subr.mxu0 0.0
    %1985 = vmatpush2.msra.mxu0 0.0
    %1986 = vmatprep.subr.mxu0 0.0
    %1987 = vmatpush2.msra.mxu0 0.0
    %1988 = vmatprep.subr.mxu0 0.0
    %1989 = vmatpush2.msra.mxu0 0.0
    %1990 = vmatprep.subr.mxu0 0.0
    %1991 = vmatpush2.msra.mxu0 0.0
    %1992 = vmatprep.subr.mxu0 0.0
    %1993 = vmatpush2.msra.mxu0 0.0
    %1994 = vmatprep.subr.mxu0 0.0
    %1995 = vmatpush2.msra.mxu0 0.0
    %1996 = vmatprep.subr.mxu0 0.0
    %1997 = vmatpush2.msra.mxu0 0.0
    %1998 = vmatprep.subr.mxu0 0.0
    %1999 = vmatpush2.msra.mxu0 0.0
    %2000 = vmatprep.subr.mxu0 0.0
    %2001 = vmatpush2.msra.mxu0 0.0
    %2002 = vmatprep.subr.mxu0 0.0
    %2003 = vmatpush2.msra.mxu0 0.0
    %2004 = vmatprep.subr.mxu0 0.0
    %2005 = vmatpush2.msra.mxu0 0.0
    %2006 = vmatprep.mubr.f32.mxu0 0.0
    %2007 = vmatmul.mubr.f32.gmra.mxu0 %v1937
    %v2008 = vpop.f32.mrf.mxu0
    %v2009 = vadd.f32 0.0, %v2008
    %v2010 = vpop.f32.mrf.mxu0
    %v2011 = vadd.f32 0.0, %v2010
    %2012 = vmatprep.mubr.f32.mxu0 0.0
    %2013 = vmatmul.mubr.f32.gmra.mxu0 %v1940
    %v2014 = vpop.f32.mrf.mxu0
    %v2015 = vadd.f32 0.0, %v2014
    %v2016 = vpop.f32.mrf.mxu0
    %v2017 = vadd.f32 0.0, %v2016
    %2018 = vdwg.mxu0
    %2019 = vmatprep.subr.mxu0 0.0
    %2020 = vmatpush1.msra.mxu0 0.0
    %2021 = vmatprep.subr.mxu0 0.0
    %2022 = vmatpush1.msra.mxu0 0.0
    %2023 = vmatprep.subr.mxu0 0.0
    %2024 = vmatpush1.msra.mxu0 0.0
    %2025 = vmatprep.subr.mxu0 0.0
    %2026 = vmatpush1.msra.mxu0 0.0
    %2027 = vmatprep.subr.mxu0 0.0
    %2028 = vmatpush1.msra.mxu0 0.0
    %2029 = vmatprep.subr.mxu0 0.0
    %2030 = vmatpush1.msra.mxu0 0.0
    %2031 = vmatprep.subr.mxu0 0.0
    %2032 = vmatpush1.msra.mxu0 0.0
    %2033 = vmatprep.subr.mxu0 0.0
    %2034 = vmatpush1.msra.mxu0 0.0
    %2035 = vmatprep.subr.mxu0 0.0
    %2036 = vmatpush1.msra.mxu0 0.0
    %2037 = vmatprep.subr.mxu0 0.0
    %2038 = vmatpush1.msra.mxu0 0.0
    %2039 = vmatprep.subr.mxu0 0.0
    %2040 = vmatpush1.msra.mxu0 0.0
    %2041 = vmatprep.subr.mxu0 0.0
    %2042 = vmatpush1.msra.mxu0 0.0
    %2043 = vmatprep.subr.mxu0 0.0
    %2044 = vmatpush1.msra.mxu0 0.0
    %2045 = vmatprep.subr.mxu0 0.0
    %2046 = vmatpush1.msra.mxu0 0.0
    %2047 = vmatprep.subr.mxu0 %v1932
    %2048 = vmatpush1.msra.mxu0 %v1931
    %2049 = vmatprep.subr.mxu0 %v1930
    %2050 = vmatpush1.msra.mxu0 %v1929
    %2051 = vmatprep.subr.mxu0 0.0
    %2052 = vmatpush2.msra.mxu0 0.0
    %2053 = vmatprep.subr.mxu0 0.0
    %2054 = vmatpush2.msra.mxu0 0.0
    %2055 = vmatprep.subr.mxu0 0.0
    %2056 = vmatpush2.msra.mxu0 0.0
    %2057 = vmatprep.subr.mxu0 0.0
    %2058 = vmatpush2.msra.mxu0 0.0
    %2059 = vmatprep.subr.mxu0 0.0
    %2060 = vmatpush2.msra.mxu0 0.0
    %2061 = vmatprep.subr.mxu0 0.0
    %2062 = vmatpush2.msra.mxu0 0.0
    %2063 = vmatprep.subr.mxu0 0.0
    %2064 = vmatpush2.msra.mxu0 0.0
    %2065 = vmatprep.subr.mxu0 0.0
    %2066 = vmatpush2.msra.mxu0 0.0
    %2067 = vmatprep.subr.mxu0 0.0
    %2068 = vmatpush2.msra.mxu0 0.0
    %2069 = vmatprep.subr.mxu0 0.0
    %2070 = vmatpush2.msra.mxu0 0.0
    %2071 = vmatprep.subr.mxu0 0.0
    %2072 = vmatpush2.msra.mxu0 0.0
    %2073 = vmatprep.subr.mxu0 0.0
    %2074 = vmatpush2.msra.mxu0 0.0
    %2075 = vmatprep.subr.mxu0 0.0
    %2076 = vmatpush2.msra.mxu0 0.0
    %2077 = vmatprep.subr.mxu0 0.0
    %2078 = vmatpush2.msra.mxu0 0.0
    %2079 = vmatprep.subr.mxu0 0.0
    %2080 = vmatpush2.msra.mxu0 0.0
    %2081 = vmatprep.subr.mxu0 0.0
    %2082 = vmatpush2.msra.mxu0 0.0
    %2083 = vmatprep.mubr.f32.mxu0 0.0
    %2084 = vmatmul.mubr.f32.gmra.mxu0 %v1937
    %v2085 = vpop.f32.mrf.mxu0
    %v2086 = vadd.f32 0.0, %v2085
    %v2087 = vpop.f32.mrf.mxu0
    %v2088 = vadd.f32 0.0, %v2087
    %2089 = vmatprep.mubr.f32.mxu0 0.0
    %2090 = vmatmul.mubr.f32.gmra.mxu0 %v1940
    %v2091 = vpop.f32.mrf.mxu0
    %v2092 = vadd.f32 0.0, %v2091
    %v2093 = vpop.f32.mrf.mxu0
    %v2094 = vadd.f32 0.0, %v2093
    %2095 = vdwg.mxu0
    %v2096 = vadd.f32 %v1778, %v2009
    %v2097 = vadd.f32 %v1780, %v2011
    %v2098 = vadd.f32 %v1784, %v2015
    %v2099 = vadd.f32 %v1786, %v2017
    %v2100 = vadd.f32 %v1855, %v2086
    %v2101 = vadd.f32 %v1857, %v2088
    %v2102 = vadd.f32 %v1861, %v2092
    %v2103 = vadd.f32 %v1863, %v2094
    %v2104 = vadd.f32 %v1396, %v1397
    %2105 = vadd.xlane.f32.xlu0 %v2104
    %v2106 = vpop.xlane.xlu0 %2105
    %v2107 = vadd.f32 %v1398, %v1399
    %2108 = vadd.xlane.f32.xlu0 %v2107
    %v2109 = vpop.xlane.xlu0 %2108
    %v2110 = vadd.f32 %v1400, %v1401
    %2111 = vadd.xlane.f32.xlu0 %v2110
    %v2112 = vpop.xlane.xlu0 %2111
    %v2113 = vadd.f32 %v1402, %v1403
    %2114 = vadd.xlane.f32.xlu0 %v2113
    %v2115 = vpop.xlane.xlu0 %2114
    %v2116 = vadd.f32 %v2106, %v2112
    %v2117 = vadd.f32 %v2109, %v2115
    %v2118 = vmul.f32 %v2116, 0.001953125
    %v2119 = vmul.f32 %v2117, 0.001953125
    %v2120 = vsub.f32 %v1396, %v2118
    %v2121 = vsub.f32 %v1397, %v2118
    %v2122 = vsub.f32 %v1398, %v2119
    %v2123 = vsub.f32 %v1399, %v2119
    %v2124 = vsub.f32 %v1400, %v2118
    %v2125 = vsub.f32 %v1401, %v2118
    %v2126 = vsub.f32 %v1402, %v2119
    %v2127 = vsub.f32 %v1403, %v2119
    %v2128 = vmul.f32 %v2120, %v2120
    %v2129 = vmul.f32 %v2121, %v2121
    %v2130 = vmul.f32 %v2122, %v2122
    %v2131 = vmul.f32 %v2123, %v2123
    %v2132 = vmul.f32 %v2124, %v2124
    %v2133 = vmul.f32 %v2125, %v2125
    %v2134 = vmul.f32 %v2126, %v2126
    %v2135 = vmul.f32 %v2127, %v2127
    %v2136 = vadd.f32 %v2128, %v2129
    %2137 = vadd.xlane.f32.xlu0 %v2136
    %v2138 = vpop.xlane.xlu0 %2137
    %v2139 = vadd.f32 %v2130, %v2131
    %2140 = vadd.xlane.f32.xlu0 %v2139
    %v2141 = vpop.xlane.xlu0 %2140
    %v2142 = vadd.f32 %v2132, %v2133
    %2143 = vadd.xlane.f32.xlu0 %v2142
    %v2144 = vpop.xlane.xlu0 %2143
    %v2145 = vadd.f32 %v2134, %v2135
    %2146 = vadd.xlane.f32.xlu0 %v2145
    %v2147 = vpop.xlane.xlu0 %2146
    %v2148 = vadd.f32 %v2138, %v2144
    %v2149 = vadd.f32 %v2141, %v2147
    %v2150 = vmul.f32 %v2148, 0.001953125
    %v2151 = vmul.f32 %v2149, 0.001953125
    %v2152 = vadd.f32 %v2150, 1e-05
    %v2153 = vadd.f32 %v2151, 1e-05
    %v2154 = vrsqrt.pop %v2152
    %v2155 = vrsqrt.pop %v2153
    %v2156 = vmul.f32 %v2120, %v2154
    %v2157 = vmul.f32 %v2121, %v2154
    %v2158 = vmul.f32 %v2122, %v2155
    %v2159 = vmul.f32 %v2123, %v2155
    %v2160 = vmul.f32 %v2124, %v2154
    %v2161 = vmul.f32 %v2125, %v2154
    %v2162 = vmul.f32 %v2126, %v2155
    %v2163 = vmul.f32 %v2127, %v2155
    %v2164 = vmax.f32 %v2156, 0.0
    %v2165 = vmax.f32 %v2157, 0.0
    %v2166 = vmax.f32 %v2158, 0.0
    %v2167 = vmax.f32 %v2159, 0.0
    %v2168 = vmax.f32 %v2160, 0.0
    %v2169 = vmax.f32 %v2161, 0.0
    %v2170 = vmax.f32 %v2162, 0.0
    %v2171 = vmax.f32 %v2163, 0.0
    %s2172 = scalar_lea.vmem [#allocation9], 48
    %v2173 = vld [vmem:[%s2172] sm:$0xff]
    %v2174 = vld [vmem:[%s2172 + $0x8] sm:$0xff]
    %v2176 = vsel %vm97, %v2173, 0
    %v2179 = vsel %vm97, %v2174, 0
    %2181 = vmatprep.subr.mxu0 0.0
    %2182 = vmatpush1.msra.mxu0 0.0
    %2183 = vmatprep.subr.mxu0 0.0
    %2184 = vmatpush1.msra.mxu0 0.0
    %2185 = vmatprep.subr.mxu0 0.0
    %2186 = vmatpush1.msra.mxu0 0.0
    %2187 = vmatprep.subr.mxu0 0.0
    %2188 = vmatpush1.msra.mxu0 0.0
    %2189 = vmatprep.subr.mxu0 0.0
    %2190 = vmatpush1.msra.mxu0 0.0
    %2191 = vmatprep.subr.mxu0 0.0
    %2192 = vmatpush1.msra.mxu0 0.0
    %2193 = vmatprep.subr.mxu0 0.0
    %2194 = vmatpush1.msra.mxu0 0.0
    %2195 = vmatprep.subr.mxu0 0.0
    %2196 = vmatpush1.msra.mxu0 0.0
    %2197 = vmatprep.subr.mxu0 0.0
    %2198 = vmatpush1.msra.mxu0 0.0
    %2199 = vmatprep.subr.mxu0 0.0
    %2200 = vmatpush1.msra.mxu0 0.0
    %2201 = vmatprep.subr.mxu0 0.0
    %2202 = vmatpush1.msra.mxu0 0.0
    %2203 = vmatprep.subr.mxu0 0.0
    %2204 = vmatpush1.msra.mxu0 0.0
    %2205 = vmatprep.subr.mxu0 0.0
    %2206 = vmatpush1.msra.mxu0 0.0
    %2207 = vmatprep.subr.mxu0 0.0
    %2208 = vmatpush1.msra.mxu0 0.0
    %2209 = vmatprep.subr.mxu0 %v2167
    %2210 = vmatpush1.msra.mxu0 %v2166
    %2211 = vmatprep.subr.mxu0 %v2165
    %2212 = vmatpush1.msra.mxu0 %v2164
    %2213 = vmatprep.subr.mxu0 0.0
    %2214 = vmatpush2.msra.mxu0 0.0
    %2215 = vmatprep.subr.mxu0 0.0
    %2216 = vmatpush2.msra.mxu0 0.0
    %2217 = vmatprep.subr.mxu0 0.0
    %2218 = vmatpush2.msra.mxu0 0.0
    %2219 = vmatprep.subr.mxu0 0.0
    %2220 = vmatpush2.msra.mxu0 0.0
    %2221 = vmatprep.subr.mxu0 0.0
    %2222 = vmatpush2.msra.mxu0 0.0
    %2223 = vmatprep.subr.mxu0 0.0
    %2224 = vmatpush2.msra.mxu0 0.0
    %2225 = vmatprep.subr.mxu0 0.0
    %2226 = vmatpush2.msra.mxu0 0.0
    %2227 = vmatprep.subr.mxu0 0.0
    %2228 = vmatpush2.msra.mxu0 0.0
    %2229 = vmatprep.subr.mxu0 0.0
    %2230 = vmatpush2.msra.mxu0 0.0
    %2231 = vmatprep.subr.mxu0 0.0
    %2232 = vmatpush2.msra.mxu0 0.0
    %2233 = vmatprep.subr.mxu0 0.0
    %2234 = vmatpush2.msra.mxu0 0.0
    %2235 = vmatprep.subr.mxu0 0.0
    %2236 = vmatpush2.msra.mxu0 0.0
    %2237 = vmatprep.subr.mxu0 0.0
    %2238 = vmatpush2.msra.mxu0 0.0
    %2239 = vmatprep.subr.mxu0 0.0
    %2240 = vmatpush2.msra.mxu0 0.0
    %2241 = vmatprep.subr.mxu0 0.0
    %2242 = vmatpush2.msra.mxu0 0.0
    %2243 = vmatprep.subr.mxu0 0.0
    %2244 = vmatpush2.msra.mxu0 0.0
    %2245 = vmatprep.mubr.f32.mxu0 0.0
    %2246 = vmatmul.mubr.f32.gmra.mxu0 %v2176
    %v2247 = vpop.f32.mrf.mxu0
    %v2248 = vadd.f32 0.0, %v2247
    %v2249 = vpop.f32.mrf.mxu0
    %v2250 = vadd.f32 0.0, %v2249
    %2251 = vmatprep.mubr.f32.mxu0 0.0
    %2252 = vmatmul.mubr.f32.gmra.mxu0 %v2179
    %v2253 = vpop.f32.mrf.mxu0
    %v2254 = vadd.f32 0.0, %v2253
    %v2255 = vpop.f32.mrf.mxu0
    %v2256 = vadd.f32 0.0, %v2255
    %2257 = vdwg.mxu0
    %2258 = vmatprep.subr.mxu0 0.0
    %2259 = vmatpush1.msra.mxu0 0.0
    %2260 = vmatprep.subr.mxu0 0.0
    %2261 = vmatpush1.msra.mxu0 0.0
    %2262 = vmatprep.subr.mxu0 0.0
    %2263 = vmatpush1.msra.mxu0 0.0
    %2264 = vmatprep.subr.mxu0 0.0
    %2265 = vmatpush1.msra.mxu0 0.0
    %2266 = vmatprep.subr.mxu0 0.0
    %2267 = vmatpush1.msra.mxu0 0.0
    %2268 = vmatprep.subr.mxu0 0.0
    %2269 = vmatpush1.msra.mxu0 0.0
    %2270 = vmatprep.subr.mxu0 0.0
    %2271 = vmatpush1.msra.mxu0 0.0
    %2272 = vmatprep.subr.mxu0 0.0
    %2273 = vmatpush1.msra.mxu0 0.0
    %2274 = vmatprep.subr.mxu0 0.0
    %2275 = vmatpush1.msra.mxu0 0.0
    %2276 = vmatprep.subr.mxu0 0.0
    %2277 = vmatpush1.msra.mxu0 0.0
    %2278 = vmatprep.subr.mxu0 0.0
    %2279 = vmatpush1.msra.mxu0 0.0
    %2280 = vmatprep.subr.mxu0 0.0
    %2281 = vmatpush1.msra.mxu0 0.0
    %2282 = vmatprep.subr.mxu0 0.0
    %2283 = vmatpush1.msra.mxu0 0.0
    %2284 = vmatprep.subr.mxu0 0.0
    %2285 = vmatpush1.msra.mxu0 0.0
    %2286 = vmatprep.subr.mxu0 %v2171
    %2287 = vmatpush1.msra.mxu0 %v2170
    %2288 = vmatprep.subr.mxu0 %v2169
    %2289 = vmatpush1.msra.mxu0 %v2168
    %2290 = vmatprep.subr.mxu0 0.0
    %2291 = vmatpush2.msra.mxu0 0.0
    %2292 = vmatprep.subr.mxu0 0.0
    %2293 = vmatpush2.msra.mxu0 0.0
    %2294 = vmatprep.subr.mxu0 0.0
    %2295 = vmatpush2.msra.mxu0 0.0
    %2296 = vmatprep.subr.mxu0 0.0
    %2297 = vmatpush2.msra.mxu0 0.0
    %2298 = vmatprep.subr.mxu0 0.0
    %2299 = vmatpush2.msra.mxu0 0.0
    %2300 = vmatprep.subr.mxu0 0.0
    %2301 = vmatpush2.msra.mxu0 0.0
    %2302 = vmatprep.subr.mxu0 0.0
    %2303 = vmatpush2.msra.mxu0 0.0
    %2304 = vmatprep.subr.mxu0 0.0
    %2305 = vmatpush2.msra.mxu0 0.0
    %2306 = vmatprep.subr.mxu0 0.0
    %2307 = vmatpush2.msra.mxu0 0.0
    %2308 = vmatprep.subr.mxu0 0.0
    %2309 = vmatpush2.msra.mxu0 0.0
    %2310 = vmatprep.subr.mxu0 0.0
    %2311 = vmatpush2.msra.mxu0 0.0
    %2312 = vmatprep.subr.mxu0 0.0
    %2313 = vmatpush2.msra.mxu0 0.0
    %2314 = vmatprep.subr.mxu0 0.0
    %2315 = vmatpush2.msra.mxu0 0.0
    %2316 = vmatprep.subr.mxu0 0.0
    %2317 = vmatpush2.msra.mxu0 0.0
    %2318 = vmatprep.subr.mxu0 0.0
    %2319 = vmatpush2.msra.mxu0 0.0
    %2320 = vmatprep.subr.mxu0 0.0
    %2321 = vmatpush2.msra.mxu0 0.0
    %2322 = vmatprep.mubr.f32.mxu0 0.0
    %2323 = vmatmul.mubr.f32.gmra.mxu0 %v2176
    %v2324 = vpop.f32.mrf.mxu0
    %v2325 = vadd.f32 0.0, %v2324
    %v2326 = vpop.f32.mrf.mxu0
    %v2327 = vadd.f32 0.0, %v2326
    %2328 = vmatprep.mubr.f32.mxu0 0.0
    %2329 = vmatmul.mubr.f32.gmra.mxu0 %v2179
    %v2330 = vpop.f32.mrf.mxu0
    %v2331 = vadd.f32 0.0, %v2330
    %v2332 = vpop.f32.mrf.mxu0
    %v2333 = vadd.f32 0.0, %v2332
    %2334 = vdwg.mxu0
    %v2335 = vadd.f32 %v2096, %v2248
    %v2336 = vadd.f32 %v2097, %v2250
    %v2337 = vadd.f32 %v2098, %v2254
    %v2338 = vadd.f32 %v2099, %v2256
    %v2339 = vadd.f32 %v2100, %v2325
    %v2340 = vadd.f32 %v2101, %v2327
    %v2341 = vadd.f32 %v2102, %v2331
    %v2342 = vadd.f32 %v2103, %v2333
    %v2343 = vadd.f32 %v2335, %v2336
    %2344 = vadd.xlane.f32.xlu0 %v2343
    %v2345 = vpop.xlane.xlu0 %2344
    %v2346 = vadd.f32 %v2337, %v2338
    %2347 = vadd.xlane.f32.xlu0 %v2346
    %v2348 = vpop.xlane.xlu0 %2347
    %v2349 = vadd.f32 %v2339, %v2340
    %2350 = vadd.xlane.f32.xlu0 %v2349
    %v2351 = vpop.xlane.xlu0 %2350
    %v2352 = vadd.f32 %v2341, %v2342
    %2353 = vadd.xlane.f32.xlu0 %v2352
    %v2354 = vpop.xlane.xlu0 %2353
    %v2355 = vadd.f32 %v2345, %v2351
    %v2356 = vadd.f32 %v2348, %v2354
    %v2357 = vmul.f32 %v2355, 0.001953125
    %v2358 = vmul.f32 %v2356, 0.001953125
    %v2359 = vsub.f32 %v2335, %v2357
    %v2360 = vsub.f32 %v2336, %v2357
    %v2361 = vsub.f32 %v2337, %v2358
    %v2362 = vsub.f32 %v2338, %v2358
    %v2363 = vsub.f32 %v2339, %v2357
    %v2364 = vsub.f32 %v2340, %v2357
    %v2365 = vsub.f32 %v2341, %v2358
    %v2366 = vsub.f32 %v2342, %v2358
    %v2367 = vmul.f32 %v2359, %v2359
    %v2368 = vmul.f32 %v2360, %v2360
    %v2369 = vmul.f32 %v2361, %v2361
    %v2370 = vmul.f32 %v2362, %v2362
    %v2371 = vmul.f32 %v2363, %v2363
    %v2372 = vmul.f32 %v2364, %v2364
    %v2373 = vmul.f32 %v2365, %v2365
    %v2374 = vmul.f32 %v2366, %v2366
    %v2375 = vadd.f32 %v2367, %v2368
    %2376 = vadd.xlane.f32.xlu0 %v2375
    %v2377 = vpop.xlane.xlu0 %2376
    %v2378 = vadd.f32 %v2369, %v2370
    %2379 = vadd.xlane.f32.xlu0 %v2378
    %v2380 = vpop.xlane.xlu0 %2379
    %v2381 = vadd.f32 %v2371, %v2372
    %2382 = vadd.xlane.f32.xlu0 %v2381
    %v2383 = vpop.xlane.xlu0 %2382
    %v2384 = vadd.f32 %v2373, %v2374
    %2385 = vadd.xlane.f32.xlu0 %v2384
    %v2386 = vpop.xlane.xlu0 %2385
    %v2387 = vadd.f32 %v2377, %v2383
    %v2388 = vadd.f32 %v2380, %v2386
    %v2389 = vmul.f32 %v2387, 0.001953125
    %v2390 = vmul.f32 %v2388, 0.001953125
    %v2391 = vadd.f32 %v2389, 1e-05
    %v2392 = vadd.f32 %v2390, 1e-05
    %v2393 = vrsqrt.pop %v2391
    %v2394 = vrsqrt.pop %v2392
    %v2395 = vmul.f32 %v2359, %v2393
    %v2396 = vmul.f32 %v2360, %v2393
    %v2397 = vmul.f32 %v2361, %v2394
    %v2398 = vmul.f32 %v2362, %v2394
    %v2399 = vmul.f32 %v2363, %v2393
    %v2400 = vmul.f32 %v2364, %v2393
    %v2401 = vmul.f32 %v2365, %v2394
    %v2402 = vmul.f32 %v2366, %v2394
    %v2403 = vadd.f32 %v87, %v2395
    %v2404 = vadd.f32 %v88, %v2396
    %v2405 = vadd.f32 %v89, %v2397
    %v2406 = vadd.f32 %v90, %v2398
    %v2407 = vadd.f32 %v91, %v2399
    %v2408 = vadd.f32 %v92, %v2400
    %v2409 = vadd.f32 %v93, %v2401
    %v2410 = vadd.f32 %v94, %v2402
    %vm2411 = vcmp.gt.f32.partialorder %v2403, 0.0001
    %vm2412 = vcmp.gt.f32.partialorder %v2404, 0.0001
    %vm2413 = vcmp.gt.f32.partialorder %v2405, 0.0001
    %vm2414 = vcmp.gt.f32.partialorder %v2406, 0.0001
    %vm2415 = vcmp.gt.f32.partialorder %v2407, 0.0001
    %vm2416 = vcmp.gt.f32.partialorder %v2408, 0.0001
    %vm2417 = vcmp.gt.f32.partialorder %v2409, 0.0001
    %vm2418 = vcmp.gt.f32.partialorder %v2410, 0.0001
    %v2419 = vsub.f32 %v2403, 0.0001
    %v2420 = vsub.f32 %v2404, 0.0001
    %v2421 = vsub.f32 %v2405, 0.0001
    %v2422 = vsub.f32 %v2406, 0.0001
    %v2423 = vsub.f32 %v2407, 0.0001
    %v2424 = vsub.f32 %v2408, 0.0001
    %v2425 = vsub.f32 %v2409, 0.0001
    %v2426 = vsub.f32 %v2410, 0.0001
    %vm2427 = vcmp.lt.f32.partialorder %v2403, -0.0001
    %vm2428 = vcmp.lt.f32.partialorder %v2404, -0.0001
    %vm2429 = vcmp.lt.f32.partialorder %v2405, -0.0001
    %vm2430 = vcmp.lt.f32.partialorder %v2406, -0.0001
    %vm2431 = vcmp.lt.f32.partialorder %v2407, -0.0001
    %vm2432 = vcmp.lt.f32.partialorder %v2408, -0.0001
    %vm2433 = vcmp.lt.f32.partialorder %v2409, -0.0001
    %vm2434 = vcmp.lt.f32.partialorder %v2410, -0.0001
    %v2435 = vadd.f32 %v2403, 0.0001
    %v2436 = vadd.f32 %v2404, 0.0001
    %v2437 = vadd.f32 %v2405, 0.0001
    %v2438 = vadd.f32 %v2406, 0.0001
    %v2439 = vadd.f32 %v2407, 0.0001
    %v2440 = vadd.f32 %v2408, 0.0001
    %v2441 = vadd.f32 %v2409, 0.0001
    %v2442 = vadd.f32 %v2410, 0.0001
    %v2443 = vsel %vm2427, %v2435, 0.0
    %v2444 = vsel %vm2428, %v2436, 0.0
    %v2445 = vsel %vm2429, %v2437, 0.0
    %v2446 = vsel %vm2430, %v2438, 0.0
    %v2447 = vsel %vm2431, %v2439, 0.0
    %v2448 = vsel %vm2432, %v2440, 0.0
    %v2449 = vsel %vm2433, %v2441, 0.0
    %v2450 = vsel %vm2434, %v2442, 0.0
    %v2451 = vsel %vm2411, %v2419, %v2443
    %v2452 = vsel %vm2412, %v2420, %v2444
    %v2453 = vsel %vm2413, %v2421, %v2445
    %v2454 = vsel %vm2414, %v2422, %v2446
    %v2455 = vsel %vm2415, %v2423, %v2447
    %v2456 = vsel %vm2416, %v2424, %v2448
    %v2457 = vsel %vm2417, %v2425, %v2449
    %v2458 = vsel %vm2418, %v2426, %v2450
    %2459 = vst [vmem:[#allocation12] sm:$0xff] %v2451
    %2460 = vst [vmem:[#allocation12 + $0x8] sm:$0xff] %v2452
    %2461 = vst [vmem:[#allocation12 + $0x10] sm:$0xff] %v2453
    %2462 = vst [vmem:[#allocation12 + $0x18] sm:$0xff] %v2454
    %2463 = vst [vmem:[#allocation12 + $0x20] sm:$0xff] %v2455
    %2464 = vst [vmem:[#allocation12 + $0x28] sm:$0xff] %v2456
    %2465 = vst [vmem:[#allocation12 + $0x30] sm:$0xff] %v2457
    %2466 = vst [vmem:[#allocation12 + $0x38] sm:$0xff] %v2458
    // Predicated region
    $region42: #{tpu_custom_call.1} parent=1 // pred_check
      _
    $region43: #{tpu_custom_call.1} parent=1 // pred_check_branch
      %2468 = sbr.rel (0) target = $region45
    $region44: #{tpu_custom_call.1} parent=1 // pred_region
      %s2470 = ssub.s32 1024, 1024
      %2471 = vsyncadd [#allocation4], %s2470
      %s2472 = sshll.u32 [#allocation12], 4
      %s2473 = int_to_ptr.vmem [resolvable:$true] %s2472
      %2478 = dma.vmem_to_hbm [thread:$0]  %s2473, 1024, %s5, [#allocation4], 256, 256, 16
    $region45: #{tpu_custom_call.1} parent=1 // pred_fallthru
      _
    // Predicated region
    $region46: #{tpu_custom_call.1} parent=1 // pred_check
      _
    $region47: #{tpu_custom_call.1} parent=1 // pred_check_branch
      %2480 = sbr.rel (0) target = $region49
    $region48: #{tpu_custom_call.1} parent=1 // pred_region
      %2481 = dma.done [#allocation4], 1024
    $region49: #{tpu_custom_call.1} parent=1 // pred_fallthru
      _
    %2482 = vsyncpa [#allocation3], 1
    %2483 = vsyncpa [#allocation7], 1
    %2484 = vsyncpa [#allocation11], 1
    %2485 = vsyncpa [#allocation4], 1
    %2486 = vsyncpa [#allocation5], 1

</llo_original>
